<compile_context>
chip_gen: v7x
topology: tpu7x:2x2x1
jax: 0.10.0
libtpu: 0.0.40
codegen_flags: <defaults>
</compile_context>

<pallas_src>
import functools

import numpy as np
import jax
import jax.numpy as jnp
from jax.experimental import pallas as pl
from jax.experimental.pallas import tpu as pltpu


# ----------------------------------------------------------------------------
# Pallas kernel 1: fused depthwise(3x3, pad=1) + pointwise(1x1) conv, no bias.
# ----------------------------------------------------------------------------
def _dsconv_kernel(x_ref, wdw_ref, wpw_ref, o_ref, pad_ref):
    # x_ref  : (1, H, W, Cin)        input tile (one batch element), f32/bf16
    # wdw_ref: (3, 3, Cin) f32       depthwise weights
    # wpw_ref: (Cin, Cout) bf16      pointwise weights (MXU operand)
    # o_ref  : (1, H, W, Cout)
    # pad_ref: (H+2, W+2, Cin) f32   VMEM scratch holding the zero-halo image
    H = o_ref.shape[1]
    W = o_ref.shape[2]
    Cin = x_ref.shape[3]

    # The scratch persists across grid steps; only the 1-pixel halo must stay
    # zero and the interior is fully overwritten below, so zero it once.
    @pl.when(pl.program_id(0) == 0)
    def _():
        pad_ref[...] = jnp.zeros(pad_ref.shape, pad_ref.dtype)

    pad_ref[1:H + 1, 1:W + 1, :] = x_ref[0].astype(jnp.float32)

    # Depthwise 3x3 taps on the VPU in f32; taps read straight from the ref.
    acc = jnp.zeros((H, W, Cin), jnp.float32)
    for dy in range(3):
        for dx in range(3):
            tap = pad_ref[dy:dy + H, dx:dx + W, :]                      # (H, W, Cin)
            wv = wdw_ref[dy:dy + 1, dx:dx + 1, :].astype(jnp.float32)   # (1, 1, Cin)
            acc = acc + tap * wv

    # Pointwise 1x1 conv == channel matmul on the MXU: bf16 in, f32 accumulate.
    y = jnp.dot(acc.reshape(H * W, Cin).astype(jnp.bfloat16), wpw_ref[...],
                preferred_element_type=jnp.float32)                     # (H*W, Cout)
    o_ref[0] = y.reshape(H, W, -1).astype(o_ref.dtype)


def depthwise_separable_conv(x_nhwc, w_dw, w_pw, out_dtype):
    B, H, W, Cin = x_nhwc.shape
    Cout = w_pw.shape[1]
    # TODO(synk): v7x (64 MiB VMEM, 2 TCs): row-tile the image (2-row halo via
    # manual DMA) with a parallel spatial grid axis and set vmem_limit_bytes
    # when shapes approach the scoped limit; whole-image blocks are fine at
    # these sizes and best on v5e/v6e.
    return pl.pallas_call(
        _dsconv_kernel,
        out_shape=jax.ShapeDtypeStruct((B, H, W, Cout), out_dtype),
        grid=(B,),
        in_specs=[
            pl.BlockSpec((1, H, W, Cin), lambda b: (b, 0, 0, 0)),
            pl.BlockSpec((3, 3, Cin), lambda b: (0, 0, 0)),
            pl.BlockSpec((Cin, Cout), lambda b: (0, 0)),
        ],
        out_specs=pl.BlockSpec((1, H, W, Cout), lambda b: (b, 0, 0, 0)),
        scratch_shapes=[pltpu.VMEM((H + 2, W + 2, Cin), jnp.float32)],
        compiler_params=pltpu.CompilerParams(dimension_semantics=("parallel",)),
    )(x_nhwc, w_dw, w_pw.astype(jnp.bfloat16))


# ----------------------------------------------------------------------------
# Pallas kernel 2: linear attention core (q-tiled, heads unrolled in-kernel).
#   s = q @ k^T ; s += rel_pos_bias ; s *= scale ; p = softmax(s) ; out = p @ v
# ----------------------------------------------------------------------------
def _attn_kernel(q_ref, kT_ref, v_ref, bias_ref, out_ref, attn_ref, *,
                 scale, heads, dim_head):
    # q_ref   : (1, TQ, heads*D)   bf16  (head-major channels: c = h*D + d)
    # kT_ref  : (1, heads, D, Nk)  bf16
    # v_ref   : (1, heads, Nk, D)  bf16
    # bias_ref: (heads, TQ, Nk)    bf16
    # out_ref : (1, TQ, heads*D)   bf16  (lane-dense merged heads)
    # attn_ref: (1, heads, TQ, Nk) bf16
    D = dim_head
    for h in range(heads):           # heads is small & static: fully unrolled
        qh = q_ref[0, :, h * D:(h + 1) * D]                           # (TQ, D)
        # q @ k^T on the MXU (bf16 operands, f32 accumulation), Nk on lanes.
        s = jnp.dot(qh, kT_ref[0, h], preferred_element_type=jnp.float32)
        # Matches PyTorch reference: (qk + bias) * scale
        s = (s + bias_ref[h].astype(jnp.float32)) * scale
        # Softmax in f32 with EXACT normalization (approx reciprocal was not
        # accurate enough for downstream consumers of `attn`).
        m = jnp.max(s, axis=-1, keepdims=True)
        e = jnp.exp(s - m)
        l = jnp.sum(e, axis=-1, keepdims=True)
        p = e * (1.0 / l)
        attn_ref[0, h] = p.astype(attn_ref.dtype)
        o = jnp.dot(p.astype(jnp.bfloat16), v_ref[0, h],
                    preferred_element_type=jnp.float32)                # (TQ, D)
        # TODO(synk): concatenate per-head results and emit one >=128-lane
        # store once minor-dim concat is verified on every target chip.
        out_ref[0, :, h * D:(h + 1) * D] = o.astype(out_ref.dtype)


def _pick_q_tile(nq, max_tile=512):
    """Largest divisor of nq that is sublane-friendly and <= max_tile."""
    if nq <= max_tile:
        return nq
    best8 = None
    for t in range(max_tile, 7, -1):
        if nq % t == 0:
            if t % 16 == 0:
                return t
            if best8 is None and t % 8 == 0:
                best8 = t
    return best8 if best8 is not None else nq


def linear_attention_core(q, kT, v, bias, scale, heads, dim_head):
    # q   : (B, Nq, heads*D)  bf16 (head-major channels)
    # kT  : (B, heads, D, Nk) bf16
    # v   : (B, heads, Nk, D) bf16
    # bias: (heads, Nq, Nk)   bf16
    B, Nq, inner = q.shape
    Nk = kT.shape[3]
    TQ = _pick_q_tile(Nq)
    NQT = Nq // TQ
    kern = functools.partial(_attn_kernel, scale=scale, heads=heads,
                             dim_head=dim_head)
    # Grid (q-tiles, batch): batch innermost so the bias block is re-used
    # across the batch loop without re-DMA; both axes parallel (megacore).
    # TODO(synk): gather the rel-pos bias in-kernel from the compact
    # (r*r, r*r, heads) table via scalar-prefetched row indices to avoid the
    # (heads, H*W, r*r) HBM expansion for large images.
    out, attn = pl.pallas_call(
        kern,
        out_shape=(jax.ShapeDtypeStruct((B, Nq, inner), jnp.bfloat16),
                   jax.ShapeDtypeStruct((B, heads, Nq, Nk), jnp.bfloat16)),
        grid=(NQT, B),
        in_specs=[
            pl.BlockSpec((1, TQ, inner), lambda qi, b: (b, qi, 0)),           # q
            pl.BlockSpec((1, heads, dim_head, Nk), lambda qi, b: (b, 0, 0, 0)),  # k^T
            pl.BlockSpec((1, heads, Nk, dim_head), lambda qi, b: (b, 0, 0, 0)),  # v
            pl.BlockSpec((heads, TQ, Nk), lambda qi, b: (0, qi, 0)),          # bias
        ],
        out_specs=(
            pl.BlockSpec((1, TQ, inner), lambda qi, b: (b, qi, 0)),
            pl.BlockSpec((1, heads, TQ, Nk), lambda qi, b: (b, 0, qi, 0)),
        ),
        compiler_params=pltpu.CompilerParams(
            dimension_semantics=("parallel", "parallel")),
    )(q, kT, v, bias)
    return out, attn


# ----------------------------------------------------------------------------
# Plain-JAX glue (matches PyTorch semantics)
# ----------------------------------------------------------------------------
def _interp_matrix(out_size, in_size):
    """Bilinear (align_corners=True) 1-D interpolation matrix, (out, in)."""
    M = np.zeros((out_size, in_size), np.float32)
    if out_size == 1:
        M[0, 0] = 1.0
        return M
    scale = (in_size - 1) / (out_size - 1)
    for j in range(out_size):
        src = j * scale
        i0 = min(int(np.floor(src)), in_size - 1)
        i1 = min(i0 + 1, in_size - 1)
        f = src - i0
        M[j, i0] += 1.0 - f
        M[j, i1] += f
    return M


def build_rel_pos_bias(table, rel_index, h, w, H, W):
    # table: ((2h-1)*(2w-1), heads), rel_index: (h*w, h*w) int -> (heads, H*W, h*w) f32
    bias = table[rel_index.reshape(-1)]                      # (h*w*h*w, heads)
    heads = bias.shape[-1]
    bias = bias.reshape(h, w, h * w, heads)
    bias = jnp.repeat(bias, H // h, axis=0)                  # repeat_interleave dim=0
    bias = jnp.repeat(bias, W // w, axis=1)                  # repeat_interleave dim=1
    bias = bias.reshape(H * W, h * w, heads)
    return jnp.transpose(bias, (2, 0, 1))                    # (heads, H*W, h*w)


class LinearAttentionPallas:
    def __init__(self, dim, heads=4, dim_head=64, reduce_size=16,
                 projection='interp', rel_pos=True, key=None):
        self.dim = dim
        self.heads = heads
        self.dim_head = dim_head
        self.inner_dim = heads * dim_head
        self.scale = dim_head ** (-0.5)
        self.reduce_size = reduce_size
        self.projection = projection
        self.rel_pos = rel_pos

        ks = jax.random.split(key, 5)

        def uinit(k, shape, fan_in):
            bound = 1.0 / np.sqrt(fan_in)
            return jax.random.uniform(k, shape, jnp.float32, -bound, bound)

        # to_qkv: depthwise (3,3,dim); pointwise (dim, 3*inner) [head-major cols]
        self.qkv_dw = uinit(ks[0], (3, 3, dim), 9)
        self.qkv_pw = uinit(ks[1], (dim, self.inner_dim * 3), dim)
        # to_out: depthwise (3,3,inner); pointwise (inner, dim) [head-major rows]
        self.out_dw = uinit(ks[2], (3, 3, self.inner_dim), 9)
        self.out_pw = uinit(ks[3], (self.inner_dim, dim), self.inner_dim)

        if rel_pos:
            n = (2 * reduce_size - 1) * (2 * reduce_size - 1)
            self.rel_table = jax.random.normal(ks[4], (n, heads), jnp.float32) * 0.02
            self.rel_index = self._make_rel_index(reduce_size, reduce_size)

    @staticmethod
    def _make_rel_index(h, w):
        coords = np.stack(np.meshgrid(np.arange(h), np.arange(w), indexing='ij'))
        coords_flat = coords.reshape(2, -1)
        rel = coords_flat[:, :, None] - coords_flat[:, None, :]
        rel = rel.transpose(1, 2, 0).copy()
        rel[:, :, 0] += h - 1
        rel[:, :, 1] += w - 1
        rel[:, :, 0] *= 2 * h - 1
        return rel.sum(-1)                                   # (h*w, h*w)

    def __call__(self, x_nchw):
        B, C, H, W = x_nchw.shape
        Hh, D, inner, r = self.heads, self.dim_head, self.inner_dim, self.reduce_size

        x = jnp.transpose(x_nchw, (0, 2, 3, 1))              # NCHW -> NHWC
        # qkv conv emits bf16 (its values feed bf16 MXU matmuls downstream).
        qkv = depthwise_separable_conv(x, self.qkv_dw, self.qkv_pw,
                                       out_dtype=jnp.bfloat16)

        # q stays in (B, Nq, heads*D) head-major layout -> no split transpose.
        q3 = qkv[..., :inner].reshape(B, H * W, inner)
        k4 = qkv[..., inner:2 * inner]
        v4 = qkv[..., 2 * inner:]

        if self.projection == 'interp' and H != r:
            Mh = jnp.asarray(_interp_matrix(r, H))
            Mw = jnp.asarray(_interp_matrix(r, W))
            k4 = jnp.einsum('iy,jx,byxc->bijc', Mh, Mw, k4.astype(jnp.float32))
            v4 = jnp.einsum('iy,jx,byxc->bijc', Mh, Mw, v4.astype(jnp.float32))
        elif self.projection == 'maxpool' and H != r:
            # TODO(synk): adaptive_max_pool2d projection path not implemented.
            raise NotImplementedError("maxpool projection not implemented")

        Nk = r * r
        k5 = k4.reshape(B, Nk, Hh, D)
        v5 = v4.reshape(B, Nk, Hh, D)
        kT = jnp.transpose(k5, (0, 2, 3, 1)).astype(jnp.bfloat16)   # (B,Hh,D,Nk)
        vh = jnp.transpose(v5, (0, 2, 1, 3)).astype(jnp.bfloat16)   # (B,Hh,Nk,D)

        if self.rel_pos:
            bias = build_rel_pos_bias(self.rel_table, self.rel_index, r, r, H, W)
        else:
            bias = jnp.zeros((Hh, H * W, Nk), jnp.float32)
        bias = bias.astype(jnp.bfloat16)         # halves the largest input DMA

        out3, attn = linear_attention_core(q3, kT, vh, bias, self.scale, Hh, D)

        # Lane-dense merged-head output: pure reshape, no merge transpose.
        out_nhwc = out3.reshape(B, H, W, inner)
        out = depthwise_separable_conv(out_nhwc, self.out_dw, self.out_pw,
                                       out_dtype=jnp.float32)
        out = jnp.transpose(out, (0, 3, 1, 2))               # NHWC -> NCHW
        # attn_drop / proj_drop have p=0.0 (identity in eval mode).
        # attn is returned in bf16 (intentional precision/traffic tradeoff).
        return out, attn


# ----------------------------------------------------------------------------
# Pure-JAX f32 reference of the same forward pass (same weight layout)
# ----------------------------------------------------------------------------
def _ref_dsconv(x_nhwc, w_dw, w_pw):
    B, H, W, Cin = x_nhwc.shape
    xp = jnp.pad(x_nhwc.astype(jnp.float32), ((0, 0), (1, 1), (1, 1), (0, 0)))
    acc = jnp.zeros((B, H, W, Cin), jnp.float32)
    for dy in range(3):
        for dx in range(3):
            acc = acc + xp[:, dy:dy + H, dx:dx + W, :] * w_dw[dy, dx, :]
    return jnp.einsum('bhwc,co->bhwo', acc, w_pw)


def _ref_forward(mod, x_nchw):
    B, C, H, W = x_nchw.shape
    Hh, D, inner, r = mod.heads, mod.dim_head, mod.inner_dim, mod.reduce_size
    x = jnp.transpose(x_nchw, (0, 2, 3, 1))
    qkv = _ref_dsconv(x, mod.qkv_dw, mod.qkv_pw)
    q, k, v = qkv[..., :inner], qkv[..., inner:2 * inner], qkv[..., 2 * inner:]
    if mod.projection == 'interp' and H != r:
        Mh = jnp.asarray(_interp_matrix(r, H))
        Mw = jnp.asarray(_interp_matrix(r, W))
        k = jnp.einsum('iy,jx,byxc->bijc', Mh, Mw, k)
        v = jnp.einsum('iy,jx,byxc->bijc', Mh, Mw, v)
    qh = q.reshape(B, H * W, Hh, D).transpose(0, 2, 1, 3)
    kh = k.reshape(B, r * r, Hh, D).transpose(0, 2, 1, 3)
    vh = v.reshape(B, r * r, Hh, D).transpose(0, 2, 1, 3)
    if mod.rel_pos:
        bias = build_rel_pos_bias(mod.rel_table, mod.rel_index, r, r, H, W)
    else:
        bias = jnp.zeros((Hh, H * W, r * r), jnp.float32)
    s = (jnp.einsum('bhqd,bhkd->bhqk', qh, kh) + bias[None]) * mod.scale
    p = jax.nn.softmax(s, axis=-1)
    o = jnp.einsum('bhqk,bhkd->bhqd', p, vh)
    o = o.transpose(0, 2, 1, 3).reshape(B, H, W, inner)
    out = _ref_dsconv(o, mod.out_dw, mod.out_pw)
    return jnp.transpose(out, (0, 3, 1, 2)), p


if __name__ == "__main__":
    key = jax.random.PRNGKey(0)
    k_param, k_x1, k_x2 = jax.random.split(key, 3)

    C, heads, dim_head, reduce_size = 8, 2, 16, 8
    mod = LinearAttentionPallas(C, heads=heads, dim_head=dim_head,
                                reduce_size=reduce_size, projection='interp',
                                rel_pos=True, key=k_param)

    def run_and_check(x, name):
        out, attn = mod(x)
        out = jax.block_until_ready(out)
        attn = jax.block_until_ready(attn)
        B, _, H, W = x.shape
        assert out.shape == (B, C, H, W), (name, out.shape)
        assert attn.shape == (B, heads, H * W, reduce_size ** 2), (name, attn.shape)
        out_np = np.asarray(out)
        attn_np = np.asarray(attn.astype(jnp.float32))
        assert np.all(np.isfinite(out_np)), name
        assert np.all(np.isfinite(attn_np)), name
        # Softmax rows sum to 1 (exact in-kernel divide; only bf16 storage rounding).
        assert np.allclose(attn_np.sum(-1), 1.0, atol=4e-3), name
        # Compare against the pure-JAX f32 reference of the same forward pass.
        ref_out, ref_attn = _ref_forward(mod, x)
        ref_out = np.asarray(jax.block_until_ready(ref_out))
        ref_attn = np.asarray(jax.block_until_ready(ref_attn))
        out_err = np.max(np.abs(out_np - ref_out)) / (np.max(np.abs(ref_out)) + 1e-6)
        attn_err = np.max(np.abs(attn_np - ref_attn))
        assert out_err < 6e-2, (name, float(out_err))
        assert attn_err < 3e-2, (name, float(attn_err))

    # Config 1: 16x16 image -> Nq = 256 (single q-tile per batch element).
    x1 = jax.random.normal(k_x1, (2, C, 16, 16), jnp.float32)
    run_and_check(x1, "cfg1")

    # Config 2: 32x32 image -> Nq = 1024, TQ = 512 (exercises the q-tiled path).
    x2 = jax.random.normal(k_x2, (1, C, 32, 32), jnp.float32)
    run_and_check(x2, "cfg2")

    print("KERNEL_OK")
</pallas_src>

<mosaic_0001>
module attributes {stable_mosaic.version = 11 : i64} {
  func.func @_dsconv_kernel(%arg0: i32, %arg1: memref<1x16x16x8xf32, #tpu.memory_space<vmem>>, %arg2: memref<3x3x8xf32, #tpu.memory_space<vmem>>, %arg3: memref<8x96xbf16, #tpu.memory_space<vmem>>, %arg4: memref<1x16x16x96xbf16, #tpu.memory_space<vmem>>, %arg5: memref<18x18x8xf32, #tpu.memory_space<vmem>>) attributes {dimension_semantics = [#tpu.dimension_semantics<parallel>], iteration_bounds = array<i64: 2>, scalar_prefetch = 0 : i64, scratch_operands = 1 : i64, tpu.core_type = #tpu.core_type<tc>, window_params = [{transform_indices = @transform_0, window_bounds = array<i64: 1, 16, 16, 8>}, {pipeline_mode = #tpu.pipeline_mode<synchronous>, transform_indices = @transform_1, window_bounds = array<i64: 3, 3, 8>}, {pipeline_mode = #tpu.pipeline_mode<synchronous>, transform_indices = @transform_2, window_bounds = array<i64: 8, 96>}, {transform_indices = @transform_3, window_bounds = array<i64: 1, 16, 16, 96>}]} {
    %c0_i32 = arith.constant 0 : i32
    %0 = arith.cmpi eq, %arg0, %c0_i32 : i32
    %1 = arith.extui %0 : i1 to i32
    %c0_i32_0 = arith.constant 0 : i32
    %2 = arith.cmpi ne, %1, %c0_i32_0 : i32
    scf.if %2 {
      %cst_66 = arith.constant 0.000000e+00 : f32
      %61 = vector.broadcast %cst_66 : f32 to vector<18x18x8xf32>
      %c0_67 = arith.constant 0 : index
      %c0_68 = arith.constant 0 : index
      %c0_69 = arith.constant 0 : index
      %62 = vector.load %arg5[%c0_67, %c0_68, %c0_69] : memref<18x18x8xf32, #tpu.memory_space<vmem>>, vector<18x18x8xf32>
      tpu.vector_store %arg5[%c0_67, %c0_68, %c0_69], %61 {strides = array<i32>} : memref<18x18x8xf32, #tpu.memory_space<vmem>>, vector<18x18x8xf32>,
    } else {
    }
    %c0 = arith.constant 0 : index
    %c0_1 = arith.constant 0 : index
    %c0_2 = arith.constant 0 : index
    %c0_3 = arith.constant 0 : index
    %3 = vector.load %arg1[%c0, %c0_1, %c0_2, %c0_3] : memref<1x16x16x8xf32, #tpu.memory_space<vmem>>, vector<1x16x16x8xf32>
    %4 = vector.shape_cast %3 : vector<1x16x16x8xf32> to vector<16x16x8xf32>
    %c1 = arith.constant 1 : index
    %c1_4 = arith.constant 1 : index
    %c0_5 = arith.constant 0 : index
    %5 = vector.load %arg5[%c1, %c1_4, %c0_5] : memref<18x18x8xf32, #tpu.memory_space<vmem>>, vector<16x16x8xf32>
    tpu.vector_store %arg5[%c1, %c1_4, %c0_5], %4 {strides = array<i32>} : memref<18x18x8xf32, #tpu.memory_space<vmem>>, vector<16x16x8xf32>,
    %cst = arith.constant 0.000000e+00 : f32
    %6 = vector.broadcast %cst : f32 to vector<16x16x8xf32>
    %c0_6 = arith.constant 0 : index
    %c0_7 = arith.constant 0 : index
    %c0_8 = arith.constant 0 : index
    %7 = vector.load %arg5[%c0_6, %c0_7, %c0_8] : memref<18x18x8xf32, #tpu.memory_space<vmem>>, vector<16x16x8xf32>
    %c0_9 = arith.constant 0 : index
    %c0_10 = arith.constant 0 : index
    %c0_11 = arith.constant 0 : index
    %8 = vector.load %arg2[%c0_9, %c0_10, %c0_11] : memref<3x3x8xf32, #tpu.memory_space<vmem>>, vector<1x1x8xf32>
    %9 = vector.broadcast %8 : vector<1x1x8xf32> to vector<16x16x8xf32>
    %10 = arith.mulf %7, %9 : vector<16x16x8xf32>
    %11 = arith.addf %6, %10 : vector<16x16x8xf32>
    %c0_12 = arith.constant 0 : index
    %c1_13 = arith.constant 1 : index
    %c0_14 = arith.constant 0 : index
    %12 = vector.load %arg5[%c0_12, %c1_13, %c0_14] : memref<18x18x8xf32, #tpu.memory_space<vmem>>, vector<16x16x8xf32>
    %c0_15 = arith.constant 0 : index
    %c1_16 = arith.constant 1 : index
    %c0_17 = arith.constant 0 : index
    %13 = vector.load %arg2[%c0_15, %c1_16, %c0_17] : memref<3x3x8xf32, #tpu.memory_space<vmem>>, vector<1x1x8xf32>
    %14 = vector.broadcast %13 : vector<1x1x8xf32> to vector<16x16x8xf32>
    %15 = arith.mulf %12, %14 : vector<16x16x8xf32>
    %16 = arith.addf %11, %15 : vector<16x16x8xf32>
    %c0_18 = arith.constant 0 : index
    %c2 = arith.constant 2 : index
    %c0_19 = arith.constant 0 : index
    %17 = vector.load %arg5[%c0_18, %c2, %c0_19] : memref<18x18x8xf32, #tpu.memory_space<vmem>>, vector<16x16x8xf32>
    %c0_20 = arith.constant 0 : index
    %c2_21 = arith.constant 2 : index
    %c0_22 = arith.constant 0 : index
    %18 = vector.load %arg2[%c0_20, %c2_21, %c0_22] : memref<3x3x8xf32, #tpu.memory_space<vmem>>, vector<1x1x8xf32>
    %19 = vector.broadcast %18 : vector<1x1x8xf32> to vector<16x16x8xf32>
    %20 = arith.mulf %17, %19 : vector<16x16x8xf32>
    %21 = arith.addf %16, %20 : vector<16x16x8xf32>
    %c1_23 = arith.constant 1 : index
    %c0_24 = arith.constant 0 : index
    %c0_25 = arith.constant 0 : index
    %22 = vector.load %arg5[%c1_23, %c0_24, %c0_25] : memref<18x18x8xf32, #tpu.memory_space<vmem>>, vector<16x16x8xf32>
    %c1_26 = arith.constant 1 : index
    %c0_27 = arith.constant 0 : index
    %c0_28 = arith.constant 0 : index
    %23 = vector.load %arg2[%c1_26, %c0_27, %c0_28] : memref<3x3x8xf32, #tpu.memory_space<vmem>>, vector<1x1x8xf32>
    %24 = vector.broadcast %23 : vector<1x1x8xf32> to vector<16x16x8xf32>
    %25 = arith.mulf %22, %24 : vector<16x16x8xf32>
    %26 = arith.addf %21, %25 : vector<16x16x8xf32>
    %c1_29 = arith.constant 1 : index
    %c1_30 = arith.constant 1 : index
    %c0_31 = arith.constant 0 : index
    %27 = vector.load %arg5[%c1_29, %c1_30, %c0_31] : memref<18x18x8xf32, #tpu.memory_space<vmem>>, vector<16x16x8xf32>
    %c1_32 = arith.constant 1 : index
    %c1_33 = arith.constant 1 : index
    %c0_34 = arith.constant 0 : index
    %28 = vector.load %arg2[%c1_32, %c1_33, %c0_34] : memref<3x3x8xf32, #tpu.memory_space<vmem>>, vector<1x1x8xf32>
    %29 = vector.broadcast %28 : vector<1x1x8xf32> to vector<16x16x8xf32>
    %30 = arith.mulf %27, %29 : vector<16x16x8xf32>
    %31 = arith.addf %26, %30 : vector<16x16x8xf32>
    %c1_35 = arith.constant 1 : index
    %c2_36 = arith.constant 2 : index
    %c0_37 = arith.constant 0 : index
    %32 = vector.load %arg5[%c1_35, %c2_36, %c0_37] : memref<18x18x8xf32, #tpu.memory_space<vmem>>, vector<16x16x8xf32>
    %c1_38 = arith.constant 1 : index
    %c2_39 = arith.constant 2 : index
    %c0_40 = arith.constant 0 : index
    %33 = vector.load %arg2[%c1_38, %c2_39, %c0_40] : memref<3x3x8xf32, #tpu.memory_space<vmem>>, vector<1x1x8xf32>
    %34 = vector.broadcast %33 : vector<1x1x8xf32> to vector<16x16x8xf32>
    %35 = arith.mulf %32, %34 : vector<16x16x8xf32>
    %36 = arith.addf %31, %35 : vector<16x16x8xf32>
    %c2_41 = arith.constant 2 : index
    %c0_42 = arith.constant 0 : index
    %c0_43 = arith.constant 0 : index
    %37 = vector.load %arg5[%c2_41, %c0_42, %c0_43] : memref<18x18x8xf32, #tpu.memory_space<vmem>>, vector<16x16x8xf32>
    %c2_44 = arith.constant 2 : index
    %c0_45 = arith.constant 0 : index
    %c0_46 = arith.constant 0 : index
    %38 = vector.load %arg2[%c2_44, %c0_45, %c0_46] : memref<3x3x8xf32, #tpu.memory_space<vmem>>, vector<1x1x8xf32>
    %39 = vector.broadcast %38 : vector<1x1x8xf32> to vector<16x16x8xf32>
    %40 = arith.mulf %37, %39 : vector<16x16x8xf32>
    %41 = arith.addf %36, %40 : vector<16x16x8xf32>
    %c2_47 = arith.constant 2 : index
    %c1_48 = arith.constant 1 : index
    %c0_49 = arith.constant 0 : index
    %42 = vector.load %arg5[%c2_47, %c1_48, %c0_49] : memref<18x18x8xf32, #tpu.memory_space<vmem>>, vector<16x16x8xf32>
    %c2_50 = arith.constant 2 : index
    %c1_51 = arith.constant 1 : index
    %c0_52 = arith.constant 0 : index
    %43 = vector.load %arg2[%c2_50, %c1_51, %c0_52] : memref<3x3x8xf32, #tpu.memory_space<vmem>>, vector<1x1x8xf32>
    %44 = vector.broadcast %43 : vector<1x1x8xf32> to vector<16x16x8xf32>
    %45 = arith.mulf %42, %44 : vector<16x16x8xf32>
    %46 = arith.addf %41, %45 : vector<16x16x8xf32>
    %c2_53 = arith.constant 2 : index
    %c2_54 = arith.constant 2 : index
    %c0_55 = arith.constant 0 : index
    %47 = vector.load %arg5[%c2_53, %c2_54, %c0_55] : memref<18x18x8xf32, #tpu.memory_space<vmem>>, vector<16x16x8xf32>
    %c2_56 = arith.constant 2 : index
    %c2_57 = arith.constant 2 : index
    %c0_58 = arith.constant 0 : index
    %48 = vector.load %arg2[%c2_56, %c2_57, %c0_58] : memref<3x3x8xf32, #tpu.memory_space<vmem>>, vector<1x1x8xf32>
    %49 = vector.broadcast %48 : vector<1x1x8xf32> to vector<16x16x8xf32>
    %50 = arith.mulf %47, %49 : vector<16x16x8xf32>
    %51 = arith.addf %46, %50 : vector<16x16x8xf32>
    %52 = vector.shape_cast %51 : vector<16x16x8xf32> to vector<256x8xf32>
    %53 = arith.truncf %52 : vector<256x8xf32> to vector<256x8xbf16>
    %c0_59 = arith.constant 0 : index
    %c0_60 = arith.constant 0 : index
    %54 = vector.load %arg3[%c0_59, %c0_60] : memref<8x96xbf16, #tpu.memory_space<vmem>>, vector<8x96xbf16>
    %cst_61 = arith.constant dense<0.000000e+00> : vector<256x96xf32>
    %55 = tpu.matmul %53, %54, %cst_61 {dimension_numbers = #tpu.dot_dimension_numbers<[1], [0], [0], [1], [0, 0, 1, 1], [], []>} : vector<256x8xbf16>, vector<8x96xbf16>, vector<256x96xf32> -> vector<256x96xf32>
    %56 = vector.shape_cast %55 : vector<256x96xf32> to vector<16x16x96xf32>
    %57 = arith.truncf %56 : vector<16x16x96xf32> to vector<16x16x96xbf16>
    %c0_62 = arith.constant 0 : index
    %c0_63 = arith.constant 0 : index
    %c0_64 = arith.constant 0 : index
    %c0_65 = arith.constant 0 : index
    %58 = vector.load %arg4[%c0_62, %c0_63, %c0_64, %c0_65] : memref<1x16x16x96xbf16, #tpu.memory_space<vmem>>, vector<1x16x16x96xbf16>
    %59 = vector.shape_cast %58 : vector<1x16x16x96xbf16> to vector<16x16x96xbf16>
    %60 = vector.shape_cast %57 : vector<16x16x96xbf16> to vector<1x16x16x96xbf16>
    tpu.vector_store %arg4[%c0_62, %c0_63, %c0_64, %c0_65], %60 {strides = array<i32>} : memref<1x16x16x96xbf16, #tpu.memory_space<vmem>>, vector<1x16x16x96xbf16>,
    return
  }
  func.func @transform_0(%arg0: i32) -> (i32, i32, i32, i32) {
    %c0_i32 = arith.constant 0 : i32
    %c0_i32_0 = arith.constant 0 : i32
    %c0_i32_1 = arith.constant 0 : i32
    %c0_i32_2 = arith.constant 0 : i32
    return %arg0, %c0_i32, %c0_i32_0, %c0_i32_1 : i32, i32, i32, i32
  }
  func.func @transform_1(%arg0: i32) -> (i32, i32, i32) {
    %c0_i32 = arith.constant 0 : i32
    %c0_i32_0 = arith.constant 0 : i32
    %c0_i32_1 = arith.constant 0 : i32
    %c0_i32_2 = arith.constant 0 : i32
    return %c0_i32, %c0_i32_0, %c0_i32_1 : i32, i32, i32
  }
  func.func @transform_2(%arg0: i32) -> (i32, i32) {
    %c0_i32 = arith.constant 0 : i32
    %c0_i32_0 = arith.constant 0 : i32
    %c0_i32_1 = arith.constant 0 : i32
    return %c0_i32, %c0_i32_0 : i32, i32
  }
  func.func @transform_3(%arg0: i32) -> (i32, i32, i32, i32) {
    %c0_i32 = arith.constant 0 : i32
    %c0_i32_0 = arith.constant 0 : i32
    %c0_i32_1 = arith.constant 0 : i32
    %c0_i32_2 = arith.constant 0 : i32
    return %arg0, %c0_i32, %c0_i32_0, %c0_i32_1 : i32, i32, i32, i32
  }
}

</mosaic_0001>

<llo_original>
// kernel: tpu_custom_call.1
$region0: #{tpu_custom_call.1}
  #allocation0 [shape = 'u32[]', space=smem, size = 0x4, offset = 0x4, fixed_abs, tag = 'smem constant byte address 0x4 - core index']
  #allocation1 [shape = 'u32[144,128]{1,0:T(1,128)}', space=vmem, size = 0x12000, scoped, tag = 'internal scratch']
  #allocation2 [shape = 'f32[18,18,8]{2,1,0:T(8,128)}', space=vmem, size = 0x36000, scoped, tag = 'scratch operand']
  %s0 = inlined_call_operand.vmem [shape: f32[2,16,16,8], index: 0, kind: input, shape index: {}]
  %s1 = inlined_call_operand.vmem [shape: f32[3,3,8], index: 1, kind: input, shape index: {}]
  %s2 = inlined_call_operand.vmem [shape: bf16[8,96], index: 2, kind: input, shape index: {}]
  %s3 = inlined_call_operand.hbm [shape: bf16[2,16,16,96], index: 3, kind: output, shape index: {}]
  %s4 = sld [smem:[#allocation0]]
  $region49: #{tpu_custom_call.1} parent=0
    _
  %s6 = ssub.s32 1, %s4
  %s7 = scalar_select 0, %s6, %s4
  $region1: #{tpu_custom_call.1} parent=0
    #allocation3 [shape = 'u8[131072]{0}', space=vmem, size = 0x20000, scoped, tag = 'output window, operand 0']
    #allocation4 [shape = 's32[2]{0}', space=sflag, size = 0x8, scoped, tag = 'scoped memory for tpu_custom_call.1']
    %8 = vsyncpa [#allocation4], 0
    %s9 = scalar_lea.sflag [#allocation4], 1
    %10 = vsyncpa %s9, 0
    loop: start=0, step=1, limit=4
    $region2: #{tpu_custom_call.1} parent=1 // loop_pre_header
      _
    $region3: #{tpu_custom_call.1} parent=1 // loop_header
      %s12 = sphi 0, %s16
      %p13 = scmp.ge.s32.totalorder %s12, 4
      %s22 = sphi 0, %s24
      %s25 = sphi 0, %s22
      %s26 = sphi 0, %s25
      %s42 = sphi 0, %s26
      %s46 = sphi 0, %s46
      %s48 = sphi 0, %s46
      %s49 = sphi 0, %s48
      %s63 = sphi 0, %s49
      %s67 = sphi 0, %s67
      %s69 = sphi 0, %s67
      %s70 = sphi 0, %s69
      %s84 = sphi 0, %s70
      %s90 = sphi 0, %s92
      %s93 = sphi 0, %s90
      %s94 = sphi 0, %s93
      %s110 = sphi 0, %s94
    $region4: #{tpu_custom_call.1} parent=1 // loop_header_branch
      %15 = sbr.rel (%p13) target = $region8
    $region5: #{tpu_custom_call.1} parent=1 // loop_body
      %s17 = ssub.s32 %s12, 1
      %s18 = ssub.s32 %s12, 2
      %s19 = sadd.s32 %s12, 1
      %s20 = ssub.s32 %s12, %s19
      %p21 = scmp.eq.s32.totalorder %s20, 0
      %s23 = sadd.s32 %s22, 1
      %s24 = scalar_select %p21, %s22, %s23
      %p27 = pneg %p21
      %p28 = scmp.eq.s32.totalorder %s12, 1
      %p29 = por %p27, %p28
      %p30 = scmp.ne.s32.totalorder %s22, %s25
      %p31 = scmp.eq.s32.totalorder %s12, 0
      %p32 = por %p30, %p31
      %p33 = scmp.ne.s32.totalorder %s22, %s25
      %p34 = scmp.eq.s32.totalorder %s17, 1
      %p35 = por %p33, %p34
      %p36 = scmp.ne.s32.totalorder %s25, %s26
      %p37 = scmp.eq.s32.totalorder %s17, 0
      %p38 = por %p36, %p37
      %p39 = scmp.ne.s32.totalorder %s25, %s26
      %p40 = scmp.eq.s32.totalorder %s18, 1
      %p41 = por %p39, %p40
      %p43 = scmp.ne.s32.totalorder %s26, %s42
      %p44 = scmp.eq.s32.totalorder %s18, 0
      %p45 = por %p43, %p44
      %s47 = sadd.s32 %s46, 1
      %p50 = scmp.eq.s32.totalorder %s12, 1
      %p51 = scmp.ne.s32.totalorder %s46, %s48
      %p52 = scmp.eq.s32.totalorder %s12, 0
      %p53 = por %p51, %p52
      %p54 = scmp.ne.s32.totalorder %s46, %s48
      %p55 = scmp.eq.s32.totalorder %s17, 1
      %p56 = por %p54, %p55
      %p57 = scmp.ne.s32.totalorder %s48, %s49
      %p58 = scmp.eq.s32.totalorder %s17, 0
      %p59 = por %p57, %p58
      %p60 = scmp.ne.s32.totalorder %s48, %s49
      %p61 = scmp.eq.s32.totalorder %s18, 1
      %p62 = por %p60, %p61
      %p64 = scmp.ne.s32.totalorder %s49, %s63
      %p65 = scmp.eq.s32.totalorder %s18, 0
      %p66 = por %p64, %p65
      %s68 = sadd.s32 %s67, 1
      %p71 = scmp.eq.s32.totalorder %s12, 1
      %p72 = scmp.ne.s32.totalorder %s67, %s69
      %p73 = scmp.eq.s32.totalorder %s12, 0
      %p74 = por %p72, %p73
      %p75 = scmp.ne.s32.totalorder %s67, %s69
      %p76 = scmp.eq.s32.totalorder %s17, 1
      %p77 = por %p75, %p76
      %p78 = scmp.ne.s32.totalorder %s69, %s70
      %p79 = scmp.eq.s32.totalorder %s17, 0
      %p80 = por %p78, %p79
      %p81 = scmp.ne.s32.totalorder %s69, %s70
      %p82 = scmp.eq.s32.totalorder %s18, 1
      %p83 = por %p81, %p82
      %p85 = scmp.ne.s32.totalorder %s70, %s84
      %p86 = scmp.eq.s32.totalorder %s18, 0
      %p87 = por %p85, %p86
      %s88 = ssub.s32 %s12, %s19
      %p89 = scmp.eq.s32.totalorder %s88, 0
      %s91 = sadd.s32 %s90, 1
      %s92 = scalar_select %p89, %s90, %s91
      %p95 = pneg %p89
      %p96 = scmp.eq.s32.totalorder %s12, 1
      %p97 = por %p95, %p96
      %p98 = scmp.ne.s32.totalorder %s90, %s93
      %p99 = scmp.eq.s32.totalorder %s12, 0
      %p100 = por %p98, %p99
      %p101 = scmp.ne.s32.totalorder %s90, %s93
      %p102 = scmp.eq.s32.totalorder %s17, 1
      %p103 = por %p101, %p102
      %p104 = scmp.ne.s32.totalorder %s93, %s94
      %p105 = scmp.eq.s32.totalorder %s17, 0
      %p106 = por %p104, %p105
      %p107 = scmp.ne.s32.totalorder %s93, %s94
      %p108 = scmp.eq.s32.totalorder %s18, 1
      %p109 = por %p107, %p108
      %p111 = scmp.ne.s32.totalorder %s94, %s110
      %p112 = scmp.eq.s32.totalorder %s18, 0
      %p113 = por %p111, %p112
      %p114 = scmp.le.s32.totalorder 1, %s12
      %p115 = scmp.lt.s32.totalorder %s12, 3
      %p116 = pnand %p114, %p115
      %p117 = pneg %p116
      // Predicated region
      $region9: #{tpu_custom_call.1} parent=5 // pred_check
        _
      $region10: #{tpu_custom_call.1} parent=5 // pred_check_branch
        %119 = sbr.rel (%p116) target = $region12
      $region11: #{tpu_custom_call.1} parent=5 // pred_region
        %s120 = ssub.s32 %s12, 1
        // Predicated region
        $region13: #{tpu_custom_call.1} parent=11 // pred_check
          %p121 = pneg %p59
        $region14: #{tpu_custom_call.1} parent=11 // pred_check_branch
          %123 = sbr.rel (%p121) target = $region16
        $region15: #{tpu_custom_call.1} parent=11 // pred_region
          _
        $region16: #{tpu_custom_call.1} parent=11 // pred_fallthru
          _
        // Predicated region
        $region17: #{tpu_custom_call.1} parent=11 // pred_check
          %p124 = pneg %p80
        $region18: #{tpu_custom_call.1} parent=11 // pred_check_branch
          %126 = sbr.rel (%p124) target = $region20
        $region19: #{tpu_custom_call.1} parent=11 // pred_region
          _
        $region20: #{tpu_custom_call.1} parent=11 // pred_fallthru
          _
      $region12: #{tpu_custom_call.1} parent=5 // pred_fallthru
        _
      %p127 = scmp.lt.s32.totalorder %s12, 2
      // Predicated region
      $region21: #{tpu_custom_call.1} parent=5 // pred_check
        %p128 = pneg %p127
      $region22: #{tpu_custom_call.1} parent=5 // pred_check_branch
        %130 = sbr.rel (%p128) target = $region24
      $region23: #{tpu_custom_call.1} parent=5 // pred_region
        // Predicated region
        $region25: #{tpu_custom_call.1} parent=23 // pred_check
          %p131 = pneg %p32
        $region26: #{tpu_custom_call.1} parent=23 // pred_check_branch
          %133 = sbr.rel (%p131) target = $region28
        $region27: #{tpu_custom_call.1} parent=23 // pred_region
          %p134 = scmp.lt.s32.totalorder %s12, 1
          %s135 = scalar_select %p134, %s12, 1
          %s136 = smul.addr %s135, 32
          %s137 = smul.addr %s136, 8
          %s138 = scalar_lea.vmem %s0, %s137
        $region28: #{tpu_custom_call.1} parent=23 // pred_fallthru
          _
      $region24: #{tpu_custom_call.1} parent=5 // pred_fallthru
        _
      %p139 = scmp.le.s32.totalorder 1, %s12
      %p140 = scmp.lt.s32.totalorder %s12, 3
      %p141 = pnand %p139, %p140
      %p142 = pneg %p141
      // Predicated region
      $region29: #{tpu_custom_call.1} parent=5 // pred_check
        _
      $region30: #{tpu_custom_call.1} parent=5 // pred_check_branch
        %144 = sbr.rel (%p141) target = $region32
      $region31: #{tpu_custom_call.1} parent=5 // pred_region
        %s145 = ssub.s32 %s12, 1
        %p146 = scmp.lt.s32.totalorder %s17, 1
        %s147 = scalar_select %p146, %s17, 1
        %s148 = smul.addr %s147, 32
        %s149 = smul.addr %s148, 8
        %s150 = scalar_lea.vmem %s0, %s149
        %p151 = pneg %p38
        %p152 = pneg %p35
        %p153 = pneg %p59
        %p154 = pneg %p56
        %p155 = pneg %p80
        %p156 = pneg %p77
        %p157 = pneg %p106
        %p158 = pneg %p103
        %s159 = sand.u32 %s93, 1
        %s160 = scalar_lea.sflag [#allocation4], %s159
        %s161 = sand.u32 %s93, 1
        %s162 = smul.addr %s161, 128
        %s163 = scalar_lea.vmem [#allocation3], %s162
        %p164 = scmp.lt.s32.totalorder %s17, 1
        %s165 = scalar_select %p164, %s17, 1
        %s166 = smul.addr %s165, 32
        %s167 = smul.addr %s166, 8
        %s168 = scalar_lea.vmem %s0, %s167
        %p170 = scmp.eq.s32.totalorder %s17, 0
        // Predicated region
        $region33: #{tpu_custom_call.1} parent=31 // pred_check
          %p171 = pneg %p170
        $region34: #{tpu_custom_call.1} parent=31 // pred_check_branch
          %173 = sbr.rel (%p171) target = $region36
        $region35: #{tpu_custom_call.1} parent=31 // pred_region
          %vm174 = vcmask 64512
          %175 = vst.msk [vmem:[#allocation2] sm:$0xff] %vm174, 0.0
          %176 = vst.msk [vmem:[#allocation2 + $0x8] sm:$0xff] %vm174, 0.0
          %vm177 = vcmask 58368
          %178 = vst.msk [vmem:[#allocation2 + $0x10] sm:$0x3] %vm177, 0.0
          %179 = vst.msk [vmem:[#allocation2 + $0x18] sm:$0xff] %vm174, 0.0
          %180 = vst.msk [vmem:[#allocation2 + $0x20] sm:$0xff] %vm174, 0.0
          %181 = vst.msk [vmem:[#allocation2 + $0x28] sm:$0x3] %vm177, 0.0
          %182 = vst.msk [vmem:[#allocation2 + $0x30] sm:$0xff] %vm174, 0.0
          %183 = vst.msk [vmem:[#allocation2 + $0x38] sm:$0xff] %vm174, 0.0
          %184 = vst.msk [vmem:[#allocation2 + $0x40] sm:$0x3] %vm177, 0.0
          %185 = vst.msk [vmem:[#allocation2 + $0x48] sm:$0xff] %vm174, 0.0
          %186 = vst.msk [vmem:[#allocation2 + $0x50] sm:$0xff] %vm174, 0.0
          %187 = vst.msk [vmem:[#allocation2 + $0x58] sm:$0x3] %vm177, 0.0
          %188 = vst.msk [vmem:[#allocation2 + $0x60] sm:$0xff] %vm174, 0.0
          %189 = vst.msk [vmem:[#allocation2 + $0x68] sm:$0xff] %vm174, 0.0
          %190 = vst.msk [vmem:[#allocation2 + $0x70] sm:$0x3] %vm177, 0.0
          %191 = vst.msk [vmem:[#allocation2 + $0x78] sm:$0xff] %vm174, 0.0
          %192 = vst.msk [vmem:[#allocation2 + $0x80] sm:$0xff] %vm174, 0.0
          %193 = vst.msk [vmem:[#allocation2 + $0x88] sm:$0x3] %vm177, 0.0
          %194 = vst.msk [vmem:[#allocation2 + $0x90] sm:$0xff] %vm174, 0.0
          %195 = vst.msk [vmem:[#allocation2 + $0x98] sm:$0xff] %vm174, 0.0
          %196 = vst.msk [vmem:[#allocation2 + $0xa0] sm:$0x3] %vm177, 0.0
          %197 = vst.msk [vmem:[#allocation2 + $0xa8] sm:$0xff] %vm174, 0.0
          %198 = vst.msk [vmem:[#allocation2 + $0xb0] sm:$0xff] %vm174, 0.0
          %199 = vst.msk [vmem:[#allocation2 + $0xb8] sm:$0x3] %vm177, 0.0
          %200 = vst.msk [vmem:[#allocation2 + $0xc0] sm:$0xff] %vm174, 0.0
          %201 = vst.msk [vmem:[#allocation2 + $0xc8] sm:$0xff] %vm174, 0.0
          %202 = vst.msk [vmem:[#allocation2 + $0xd0] sm:$0x3] %vm177, 0.0
          %203 = vst.msk [vmem:[#allocation2 + $0xd8] sm:$0xff] %vm174, 0.0
          %204 = vst.msk [vmem:[#allocation2 + $0xe0] sm:$0xff] %vm174, 0.0
          %205 = vst.msk [vmem:[#allocation2 + $0xe8] sm:$0x3] %vm177, 0.0
          %206 = vst.msk [vmem:[#allocation2 + $0xf0] sm:$0xff] %vm174, 0.0
          %207 = vst.msk [vmem:[#allocation2 + $0xf8] sm:$0xff] %vm174, 0.0
          %208 = vst.msk [vmem:[#allocation2 + $0x100] sm:$0x3] %vm177, 0.0
          %209 = vst.msk [vmem:[#allocation2 + $0x108] sm:$0xff] %vm174, 0.0
          %210 = vst.msk [vmem:[#allocation2 + $0x110] sm:$0xff] %vm174, 0.0
          %211 = vst.msk [vmem:[#allocation2 + $0x118] sm:$0x3] %vm177, 0.0
          %212 = vst.msk [vmem:[#allocation2 + $0x120] sm:$0xff] %vm174, 0.0
          %213 = vst.msk [vmem:[#allocation2 + $0x128] sm:$0xff] %vm174, 0.0
          %214 = vst.msk [vmem:[#allocation2 + $0x130] sm:$0x3] %vm177, 0.0
          %215 = vst.msk [vmem:[#allocation2 + $0x138] sm:$0xff] %vm174, 0.0
          %216 = vst.msk [vmem:[#allocation2 + $0x140] sm:$0xff] %vm174, 0.0
          %217 = vst.msk [vmem:[#allocation2 + $0x148] sm:$0x3] %vm177, 0.0
          %218 = vst.msk [vmem:[#allocation2 + $0x150] sm:$0xff] %vm174, 0.0
          %219 = vst.msk [vmem:[#allocation2 + $0x158] sm:$0xff] %vm174, 0.0
          %220 = vst.msk [vmem:[#allocation2 + $0x160] sm:$0x3] %vm177, 0.0
          %221 = vst.msk [vmem:[#allocation2 + $0x168] sm:$0xff] %vm174, 0.0
          %222 = vst.msk [vmem:[#allocation2 + $0x170] sm:$0xff] %vm174, 0.0
          %223 = vst.msk [vmem:[#allocation2 + $0x178] sm:$0x3] %vm177, 0.0
          %224 = vst.msk [vmem:[#allocation2 + $0x180] sm:$0xff] %vm174, 0.0
          %225 = vst.msk [vmem:[#allocation2 + $0x188] sm:$0xff] %vm174, 0.0
          %226 = vst.msk [vmem:[#allocation2 + $0x190] sm:$0x3] %vm177, 0.0
          %227 = vst.msk [vmem:[#allocation2 + $0x198] sm:$0xff] %vm174, 0.0
          %228 = vst.msk [vmem:[#allocation2 + $0x1a0] sm:$0xff] %vm174, 0.0
          %229 = vst.msk [vmem:[#allocation2 + $0x1a8] sm:$0x3] %vm177, 0.0
        $region36: #{tpu_custom_call.1} parent=31 // pred_fallthru
          _
        %v230 = vld [vmem:[%s168] sm:$0xff]
        %v231 = vld [vmem:[%s168 + $0x8] sm:$0xff]
        %v232 = vld [vmem:[%s168 + $0x10] sm:$0xff]
        %v233 = vld [vmem:[%s168 + $0x18] sm:$0xff]
        %v234 = vld [vmem:[%s168 + $0x20] sm:$0xff]
        %v235 = vld [vmem:[%s168 + $0x28] sm:$0xff]
        %v236 = vld [vmem:[%s168 + $0x30] sm:$0xff]
        %v237 = vld [vmem:[%s168 + $0x38] sm:$0xff]
        %v238 = vld [vmem:[%s168 + $0x40] sm:$0xff]
        %v239 = vld [vmem:[%s168 + $0x48] sm:$0xff]
        %v240 = vld [vmem:[%s168 + $0x50] sm:$0xff]
        %v241 = vld [vmem:[%s168 + $0x58] sm:$0xff]
        %v242 = vld [vmem:[%s168 + $0x60] sm:$0xff]
        %v243 = vld [vmem:[%s168 + $0x68] sm:$0xff]
        %v244 = vld [vmem:[%s168 + $0x70] sm:$0xff]
        %v245 = vld [vmem:[%s168 + $0x78] sm:$0xff]
        %v246 = vld [vmem:[%s168 + $0x80] sm:$0xff]
        %v247 = vld [vmem:[%s168 + $0x88] sm:$0xff]
        %v248 = vld [vmem:[%s168 + $0x90] sm:$0xff]
        %v249 = vld [vmem:[%s168 + $0x98] sm:$0xff]
        %v250 = vld [vmem:[%s168 + $0xa0] sm:$0xff]
        %v251 = vld [vmem:[%s168 + $0xa8] sm:$0xff]
        %v252 = vld [vmem:[%s168 + $0xb0] sm:$0xff]
        %v253 = vld [vmem:[%s168 + $0xb8] sm:$0xff]
        %v254 = vld [vmem:[%s168 + $0xc0] sm:$0xff]
        %v255 = vld [vmem:[%s168 + $0xc8] sm:$0xff]
        %v256 = vld [vmem:[%s168 + $0xd0] sm:$0xff]
        %v257 = vld [vmem:[%s168 + $0xd8] sm:$0xff]
        %v258 = vld [vmem:[%s168 + $0xe0] sm:$0xff]
        %v259 = vld [vmem:[%s168 + $0xe8] sm:$0xff]
        %v260 = vld [vmem:[%s168 + $0xf0] sm:$0xff]
        %v261 = vld [vmem:[%s168 + $0xf8] sm:$0xff]
        %s262 = scalar_lea.vmem [#allocation2], 24
        %vm263 = vcmask 64512
        %264 = vst.msk [vmem:[%s262 + $0x1] sm:$0xff] %vm263, %v230
        %265 = vst.msk [vmem:[%s262 + $0x9] sm:$0xff] %vm263, %v231
        %266 = vst.msk [vmem:[%s262 + $0x19] sm:$0xff] %vm263, %v232
        %267 = vst.msk [vmem:[%s262 + $0x21] sm:$0xff] %vm263, %v233
        %268 = vst.msk [vmem:[%s262 + $0x31] sm:$0xff] %vm263, %v234
        %269 = vst.msk [vmem:[%s262 + $0x39] sm:$0xff] %vm263, %v235
        %270 = vst.msk [vmem:[%s262 + $0x49] sm:$0xff] %vm263, %v236
        %271 = vst.msk [vmem:[%s262 + $0x51] sm:$0xff] %vm263, %v237
        %272 = vst.msk [vmem:[%s262 + $0x61] sm:$0xff] %vm263, %v238
        %273 = vst.msk [vmem:[%s262 + $0x69] sm:$0xff] %vm263, %v239
        %274 = vst.msk [vmem:[%s262 + $0x79] sm:$0xff] %vm263, %v240
        %275 = vst.msk [vmem:[%s262 + $0x81] sm:$0xff] %vm263, %v241
        %276 = vst.msk [vmem:[%s262 + $0x91] sm:$0xff] %vm263, %v242
        %277 = vst.msk [vmem:[%s262 + $0x99] sm:$0xff] %vm263, %v243
        %278 = vst.msk [vmem:[%s262 + $0xa9] sm:$0xff] %vm263, %v244
        %279 = vst.msk [vmem:[%s262 + $0xb1] sm:$0xff] %vm263, %v245
        %280 = vst.msk [vmem:[%s262 + $0xc1] sm:$0xff] %vm263, %v246
        %281 = vst.msk [vmem:[%s262 + $0xc9] sm:$0xff] %vm263, %v247
        %282 = vst.msk [vmem:[%s262 + $0xd9] sm:$0xff] %vm263, %v248
        %283 = vst.msk [vmem:[%s262 + $0xe1] sm:$0xff] %vm263, %v249
        %284 = vst.msk [vmem:[%s262 + $0xf1] sm:$0xff] %vm263, %v250
        %285 = vst.msk [vmem:[%s262 + $0xf9] sm:$0xff] %vm263, %v251
        %286 = vst.msk [vmem:[%s262 + $0x109] sm:$0xff] %vm263, %v252
        %287 = vst.msk [vmem:[%s262 + $0x111] sm:$0xff] %vm263, %v253
        %288 = vst.msk [vmem:[%s262 + $0x121] sm:$0xff] %vm263, %v254
        %289 = vst.msk [vmem:[%s262 + $0x129] sm:$0xff] %vm263, %v255
        %290 = vst.msk [vmem:[%s262 + $0x139] sm:$0xff] %vm263, %v256
        %291 = vst.msk [vmem:[%s262 + $0x141] sm:$0xff] %vm263, %v257
        %292 = vst.msk [vmem:[%s262 + $0x151] sm:$0xff] %vm263, %v258
        %293 = vst.msk [vmem:[%s262 + $0x159] sm:$0xff] %vm263, %v259
        %294 = vst.msk [vmem:[%s262 + $0x169] sm:$0xff] %vm263, %v260
        %295 = vst.msk [vmem:[%s262 + $0x171] sm:$0xff] %vm263, %v261
        %v296 = vld [vmem:[#allocation2] sm:$0xff]
        %v297 = vld [vmem:[#allocation2 + $0x8] sm:$0xff]
        %v298 = vld [vmem:[#allocation2 + $0x18] sm:$0xff]
        %v299 = vld [vmem:[#allocation2 + $0x20] sm:$0xff]
        %v300 = vld [vmem:[#allocation2 + $0x30] sm:$0xff]
        %v301 = vld [vmem:[#allocation2 + $0x38] sm:$0xff]
        %v302 = vld [vmem:[#allocation2 + $0x48] sm:$0xff]
        %v303 = vld [vmem:[#allocation2 + $0x50] sm:$0xff]
        %v304 = vld [vmem:[#allocation2 + $0x60] sm:$0xff]
        %v305 = vld [vmem:[#allocation2 + $0x68] sm:$0xff]
        %v306 = vld [vmem:[#allocation2 + $0x78] sm:$0xff]
        %v307 = vld [vmem:[#allocation2 + $0x80] sm:$0xff]
        %v308 = vld [vmem:[#allocation2 + $0x90] sm:$0xff]
        %v309 = vld [vmem:[#allocation2 + $0x98] sm:$0xff]
        %v310 = vld [vmem:[#allocation2 + $0xa8] sm:$0xff]
        %v311 = vld [vmem:[#allocation2 + $0xb0] sm:$0xff]
        %v312 = vld [vmem:[#allocation2 + $0xc0] sm:$0xff]
        %v313 = vld [vmem:[#allocation2 + $0xc8] sm:$0xff]
        %v314 = vld [vmem:[#allocation2 + $0xd8] sm:$0xff]
        %v315 = vld [vmem:[#allocation2 + $0xe0] sm:$0xff]
        %v316 = vld [vmem:[#allocation2 + $0xf0] sm:$0xff]
        %v317 = vld [vmem:[#allocation2 + $0xf8] sm:$0xff]
        %v318 = vld [vmem:[#allocation2 + $0x108] sm:$0xff]
        %v319 = vld [vmem:[#allocation2 + $0x110] sm:$0xff]
        %v320 = vld [vmem:[#allocation2 + $0x120] sm:$0xff]
        %v321 = vld [vmem:[#allocation2 + $0x128] sm:$0xff]
        %v322 = vld [vmem:[#allocation2 + $0x138] sm:$0xff]
        %v323 = vld [vmem:[#allocation2 + $0x140] sm:$0xff]
        %v324 = vld [vmem:[#allocation2 + $0x150] sm:$0xff]
        %v325 = vld [vmem:[#allocation2 + $0x158] sm:$0xff]
        %v326 = vld [vmem:[#allocation2 + $0x168] sm:$0xff]
        %v327 = vld [vmem:[#allocation2 + $0x170] sm:$0xff]
        %v328 = vld [vmem:[%s1] sm:$0x1]
        %v329 = vlaneseq
        %v330 = vshrl.u32 %v329, 7
        %v331 = vsub.s32 0, %v330
        %v332 = vrot.slane %v328, %v331
        %v333 = vmul.f32 %v296, %v332
        %v334 = vmul.f32 %v297, %v332
        %v335 = vmul.f32 %v298, %v332
        %v336 = vmul.f32 %v299, %v332
        %v337 = vmul.f32 %v300, %v332
        %v338 = vmul.f32 %v301, %v332
        %v339 = vmul.f32 %v302, %v332
        %v340 = vmul.f32 %v303, %v332
        %v341 = vmul.f32 %v304, %v332
        %v342 = vmul.f32 %v305, %v332
        %v343 = vmul.f32 %v306, %v332
        %v344 = vmul.f32 %v307, %v332
        %v345 = vmul.f32 %v308, %v332
        %v346 = vmul.f32 %v309, %v332
        %v347 = vmul.f32 %v310, %v332
        %v348 = vmul.f32 %v311, %v332
        %v349 = vmul.f32 %v312, %v332
        %v350 = vmul.f32 %v313, %v332
        %v351 = vmul.f32 %v314, %v332
        %v352 = vmul.f32 %v315, %v332
        %v353 = vmul.f32 %v316, %v332
        %v354 = vmul.f32 %v317, %v332
        %v355 = vmul.f32 %v318, %v332
        %v356 = vmul.f32 %v319, %v332
        %v357 = vmul.f32 %v320, %v332
        %v358 = vmul.f32 %v321, %v332
        %v359 = vmul.f32 %v322, %v332
        %v360 = vmul.f32 %v323, %v332
        %v361 = vmul.f32 %v324, %v332
        %v362 = vmul.f32 %v325, %v332
        %v363 = vmul.f32 %v326, %v332
        %v364 = vmul.f32 %v327, %v332
        %v365 = vadd.f32 %v333, 0.0
        %v366 = vadd.f32 %v334, 0.0
        %v367 = vadd.f32 %v335, 0.0
        %v368 = vadd.f32 %v336, 0.0
        %v369 = vadd.f32 %v337, 0.0
        %v370 = vadd.f32 %v338, 0.0
        %v371 = vadd.f32 %v339, 0.0
        %v372 = vadd.f32 %v340, 0.0
        %v373 = vadd.f32 %v341, 0.0
        %v374 = vadd.f32 %v342, 0.0
        %v375 = vadd.f32 %v343, 0.0
        %v376 = vadd.f32 %v344, 0.0
        %v377 = vadd.f32 %v345, 0.0
        %v378 = vadd.f32 %v346, 0.0
        %v379 = vadd.f32 %v347, 0.0
        %v380 = vadd.f32 %v348, 0.0
        %v381 = vadd.f32 %v349, 0.0
        %v382 = vadd.f32 %v350, 0.0
        %v383 = vadd.f32 %v351, 0.0
        %v384 = vadd.f32 %v352, 0.0
        %v385 = vadd.f32 %v353, 0.0
        %v386 = vadd.f32 %v354, 0.0
        %v387 = vadd.f32 %v355, 0.0
        %v388 = vadd.f32 %v356, 0.0
        %v389 = vadd.f32 %v357, 0.0
        %v390 = vadd.f32 %v358, 0.0
        %v391 = vadd.f32 %v359, 0.0
        %v392 = vadd.f32 %v360, 0.0
        %v393 = vadd.f32 %v361, 0.0
        %v394 = vadd.f32 %v362, 0.0
        %v395 = vadd.f32 %v363, 0.0
        %v396 = vadd.f32 %v364, 0.0
        %v397 = vld [vmem:[#allocation2 + $0x1] sm:$0xff]
        %v398 = vld [vmem:[#allocation2 + $0x9] sm:$0xff]
        %v399 = vld [vmem:[#allocation2 + $0x19] sm:$0xff]
        %v400 = vld [vmem:[#allocation2 + $0x21] sm:$0xff]
        %v401 = vld [vmem:[#allocation2 + $0x31] sm:$0xff]
        %v402 = vld [vmem:[#allocation2 + $0x39] sm:$0xff]
        %v403 = vld [vmem:[#allocation2 + $0x49] sm:$0xff]
        %v404 = vld [vmem:[#allocation2 + $0x51] sm:$0xff]
        %v405 = vld [vmem:[#allocation2 + $0x61] sm:$0xff]
        %v406 = vld [vmem:[#allocation2 + $0x69] sm:$0xff]
        %v407 = vld [vmem:[#allocation2 + $0x79] sm:$0xff]
        %v408 = vld [vmem:[#allocation2 + $0x81] sm:$0xff]
        %v409 = vld [vmem:[#allocation2 + $0x91] sm:$0xff]
        %v410 = vld [vmem:[#allocation2 + $0x99] sm:$0xff]
        %v411 = vld [vmem:[#allocation2 + $0xa9] sm:$0xff]
        %v412 = vld [vmem:[#allocation2 + $0xb1] sm:$0xff]
        %v413 = vld [vmem:[#allocation2 + $0xc1] sm:$0xff]
        %v414 = vld [vmem:[#allocation2 + $0xc9] sm:$0xff]
        %v415 = vld [vmem:[#allocation2 + $0xd9] sm:$0xff]
        %v416 = vld [vmem:[#allocation2 + $0xe1] sm:$0xff]
        %v417 = vld [vmem:[#allocation2 + $0xf1] sm:$0xff]
        %v418 = vld [vmem:[#allocation2 + $0xf9] sm:$0xff]
        %v419 = vld [vmem:[#allocation2 + $0x109] sm:$0xff]
        %v420 = vld [vmem:[#allocation2 + $0x111] sm:$0xff]
        %v421 = vld [vmem:[#allocation2 + $0x121] sm:$0xff]
        %v422 = vld [vmem:[#allocation2 + $0x129] sm:$0xff]
        %v423 = vld [vmem:[#allocation2 + $0x139] sm:$0xff]
        %v424 = vld [vmem:[#allocation2 + $0x141] sm:$0xff]
        %v425 = vld [vmem:[#allocation2 + $0x151] sm:$0xff]
        %v426 = vld [vmem:[#allocation2 + $0x159] sm:$0xff]
        %v427 = vld [vmem:[#allocation2 + $0x169] sm:$0xff]
        %v428 = vld [vmem:[#allocation2 + $0x171] sm:$0xff]
        %v429 = vld [vmem:[%s1 + $0x1] sm:$0x1]
        %v430 = vlaneseq
        %v431 = vshrl.u32 %v430, 7
        %v432 = vsub.s32 0, %v431
        %v433 = vrot.slane %v429, %v432
        %v434 = vmul.f32 %v397, %v433
        %v435 = vmul.f32 %v398, %v433
        %v436 = vmul.f32 %v399, %v433
        %v437 = vmul.f32 %v400, %v433
        %v438 = vmul.f32 %v401, %v433
        %v439 = vmul.f32 %v402, %v433
        %v440 = vmul.f32 %v403, %v433
        %v441 = vmul.f32 %v404, %v433
        %v442 = vmul.f32 %v405, %v433
        %v443 = vmul.f32 %v406, %v433
        %v444 = vmul.f32 %v407, %v433
        %v445 = vmul.f32 %v408, %v433
        %v446 = vmul.f32 %v409, %v433
        %v447 = vmul.f32 %v410, %v433
        %v448 = vmul.f32 %v411, %v433
        %v449 = vmul.f32 %v412, %v433
        %v450 = vmul.f32 %v413, %v433
        %v451 = vmul.f32 %v414, %v433
        %v452 = vmul.f32 %v415, %v433
        %v453 = vmul.f32 %v416, %v433
        %v454 = vmul.f32 %v417, %v433
        %v455 = vmul.f32 %v418, %v433
        %v456 = vmul.f32 %v419, %v433
        %v457 = vmul.f32 %v420, %v433
        %v458 = vmul.f32 %v421, %v433
        %v459 = vmul.f32 %v422, %v433
        %v460 = vmul.f32 %v423, %v433
        %v461 = vmul.f32 %v424, %v433
        %v462 = vmul.f32 %v425, %v433
        %v463 = vmul.f32 %v426, %v433
        %v464 = vmul.f32 %v427, %v433
        %v465 = vmul.f32 %v428, %v433
        %v466 = vadd.f32 %v365, %v434
        %v467 = vadd.f32 %v366, %v435
        %v468 = vadd.f32 %v367, %v436
        %v469 = vadd.f32 %v368, %v437
        %v470 = vadd.f32 %v369, %v438
        %v471 = vadd.f32 %v370, %v439
        %v472 = vadd.f32 %v371, %v440
        %v473 = vadd.f32 %v372, %v441
        %v474 = vadd.f32 %v373, %v442
        %v475 = vadd.f32 %v374, %v443
        %v476 = vadd.f32 %v375, %v444
        %v477 = vadd.f32 %v376, %v445
        %v478 = vadd.f32 %v377, %v446
        %v479 = vadd.f32 %v378, %v447
        %v480 = vadd.f32 %v379, %v448
        %v481 = vadd.f32 %v380, %v449
        %v482 = vadd.f32 %v381, %v450
        %v483 = vadd.f32 %v382, %v451
        %v484 = vadd.f32 %v383, %v452
        %v485 = vadd.f32 %v384, %v453
        %v486 = vadd.f32 %v385, %v454
        %v487 = vadd.f32 %v386, %v455
        %v488 = vadd.f32 %v387, %v456
        %v489 = vadd.f32 %v388, %v457
        %v490 = vadd.f32 %v389, %v458
        %v491 = vadd.f32 %v390, %v459
        %v492 = vadd.f32 %v391, %v460
        %v493 = vadd.f32 %v392, %v461
        %v494 = vadd.f32 %v393, %v462
        %v495 = vadd.f32 %v394, %v463
        %v496 = vadd.f32 %v395, %v464
        %v497 = vadd.f32 %v396, %v465
        %v498 = vld [vmem:[#allocation2 + $0x2] sm:$0xff]
        %v499 = vld [vmem:[#allocation2 + $0xa] sm:$0xff]
        %v500 = vld [vmem:[#allocation2 + $0x1a] sm:$0xff]
        %v501 = vld [vmem:[#allocation2 + $0x22] sm:$0xff]
        %v502 = vld [vmem:[#allocation2 + $0x32] sm:$0xff]
        %v503 = vld [vmem:[#allocation2 + $0x3a] sm:$0xff]
        %v504 = vld [vmem:[#allocation2 + $0x4a] sm:$0xff]
        %v505 = vld [vmem:[#allocation2 + $0x52] sm:$0xff]
        %v506 = vld [vmem:[#allocation2 + $0x62] sm:$0xff]
        %v507 = vld [vmem:[#allocation2 + $0x6a] sm:$0xff]
        %v508 = vld [vmem:[#allocation2 + $0x7a] sm:$0xff]
        %v509 = vld [vmem:[#allocation2 + $0x82] sm:$0xff]
        %v510 = vld [vmem:[#allocation2 + $0x92] sm:$0xff]
        %v511 = vld [vmem:[#allocation2 + $0x9a] sm:$0xff]
        %v512 = vld [vmem:[#allocation2 + $0xaa] sm:$0xff]
        %v513 = vld [vmem:[#allocation2 + $0xb2] sm:$0xff]
        %v514 = vld [vmem:[#allocation2 + $0xc2] sm:$0xff]
        %v515 = vld [vmem:[#allocation2 + $0xca] sm:$0xff]
        %v516 = vld [vmem:[#allocation2 + $0xda] sm:$0xff]
        %v517 = vld [vmem:[#allocation2 + $0xe2] sm:$0xff]
        %v518 = vld [vmem:[#allocation2 + $0xf2] sm:$0xff]
        %v519 = vld [vmem:[#allocation2 + $0xfa] sm:$0xff]
        %v520 = vld [vmem:[#allocation2 + $0x10a] sm:$0xff]
        %v521 = vld [vmem:[#allocation2 + $0x112] sm:$0xff]
        %v522 = vld [vmem:[#allocation2 + $0x122] sm:$0xff]
        %v523 = vld [vmem:[#allocation2 + $0x12a] sm:$0xff]
        %v524 = vld [vmem:[#allocation2 + $0x13a] sm:$0xff]
        %v525 = vld [vmem:[#allocation2 + $0x142] sm:$0xff]
        %v526 = vld [vmem:[#allocation2 + $0x152] sm:$0xff]
        %v527 = vld [vmem:[#allocation2 + $0x15a] sm:$0xff]
        %v528 = vld [vmem:[#allocation2 + $0x16a] sm:$0xff]
        %v529 = vld [vmem:[#allocation2 + $0x172] sm:$0xff]
        %v530 = vld [vmem:[%s1 + $0x2] sm:$0x1]
        %v531 = vlaneseq
        %v532 = vshrl.u32 %v531, 7
        %v533 = vsub.s32 0, %v532
        %v534 = vrot.slane %v530, %v533
        %v535 = vmul.f32 %v498, %v534
        %v536 = vmul.f32 %v499, %v534
        %v537 = vmul.f32 %v500, %v534
        %v538 = vmul.f32 %v501, %v534
        %v539 = vmul.f32 %v502, %v534
        %v540 = vmul.f32 %v503, %v534
        %v541 = vmul.f32 %v504, %v534
        %v542 = vmul.f32 %v505, %v534
        %v543 = vmul.f32 %v506, %v534
        %v544 = vmul.f32 %v507, %v534
        %v545 = vmul.f32 %v508, %v534
        %v546 = vmul.f32 %v509, %v534
        %v547 = vmul.f32 %v510, %v534
        %v548 = vmul.f32 %v511, %v534
        %v549 = vmul.f32 %v512, %v534
        %v550 = vmul.f32 %v513, %v534
        %v551 = vmul.f32 %v514, %v534
        %v552 = vmul.f32 %v515, %v534
        %v553 = vmul.f32 %v516, %v534
        %v554 = vmul.f32 %v517, %v534
        %v555 = vmul.f32 %v518, %v534
        %v556 = vmul.f32 %v519, %v534
        %v557 = vmul.f32 %v520, %v534
        %v558 = vmul.f32 %v521, %v534
        %v559 = vmul.f32 %v522, %v534
        %v560 = vmul.f32 %v523, %v534
        %v561 = vmul.f32 %v524, %v534
        %v562 = vmul.f32 %v525, %v534
        %v563 = vmul.f32 %v526, %v534
        %v564 = vmul.f32 %v527, %v534
        %v565 = vmul.f32 %v528, %v534
        %v566 = vmul.f32 %v529, %v534
        %v567 = vadd.f32 %v466, %v535
        %v568 = vadd.f32 %v467, %v536
        %v569 = vadd.f32 %v468, %v537
        %v570 = vadd.f32 %v469, %v538
        %v571 = vadd.f32 %v470, %v539
        %v572 = vadd.f32 %v471, %v540
        %v573 = vadd.f32 %v472, %v541
        %v574 = vadd.f32 %v473, %v542
        %v575 = vadd.f32 %v474, %v543
        %v576 = vadd.f32 %v475, %v544
        %v577 = vadd.f32 %v476, %v545
        %v578 = vadd.f32 %v477, %v546
        %v579 = vadd.f32 %v478, %v547
        %v580 = vadd.f32 %v479, %v548
        %v581 = vadd.f32 %v480, %v549
        %v582 = vadd.f32 %v481, %v550
        %v583 = vadd.f32 %v482, %v551
        %v584 = vadd.f32 %v483, %v552
        %v585 = vadd.f32 %v484, %v553
        %v586 = vadd.f32 %v485, %v554
        %v587 = vadd.f32 %v486, %v555
        %v588 = vadd.f32 %v487, %v556
        %v589 = vadd.f32 %v488, %v557
        %v590 = vadd.f32 %v489, %v558
        %v591 = vadd.f32 %v490, %v559
        %v592 = vadd.f32 %v491, %v560
        %v593 = vadd.f32 %v492, %v561
        %v594 = vadd.f32 %v493, %v562
        %v595 = vadd.f32 %v494, %v563
        %v596 = vadd.f32 %v495, %v564
        %v597 = vadd.f32 %v496, %v565
        %v598 = vadd.f32 %v497, %v566
        %v599 = vld [vmem:[%s262] sm:$0xff]
        %v600 = vld [vmem:[%s262 + $0x8] sm:$0xff]
        %v601 = vld [vmem:[%s262 + $0x18] sm:$0xff]
        %v602 = vld [vmem:[%s262 + $0x20] sm:$0xff]
        %v603 = vld [vmem:[%s262 + $0x30] sm:$0xff]
        %v604 = vld [vmem:[%s262 + $0x38] sm:$0xff]
        %v605 = vld [vmem:[%s262 + $0x48] sm:$0xff]
        %v606 = vld [vmem:[%s262 + $0x50] sm:$0xff]
        %v607 = vld [vmem:[%s262 + $0x60] sm:$0xff]
        %v608 = vld [vmem:[%s262 + $0x68] sm:$0xff]
        %v609 = vld [vmem:[%s262 + $0x78] sm:$0xff]
        %v610 = vld [vmem:[%s262 + $0x80] sm:$0xff]
        %v611 = vld [vmem:[%s262 + $0x90] sm:$0xff]
        %v612 = vld [vmem:[%s262 + $0x98] sm:$0xff]
        %v613 = vld [vmem:[%s262 + $0xa8] sm:$0xff]
        %v614 = vld [vmem:[%s262 + $0xb0] sm:$0xff]
        %v615 = vld [vmem:[%s262 + $0xc0] sm:$0xff]
        %v616 = vld [vmem:[%s262 + $0xc8] sm:$0xff]
        %v617 = vld [vmem:[%s262 + $0xd8] sm:$0xff]
        %v618 = vld [vmem:[%s262 + $0xe0] sm:$0xff]
        %v619 = vld [vmem:[%s262 + $0xf0] sm:$0xff]
        %v620 = vld [vmem:[%s262 + $0xf8] sm:$0xff]
        %v621 = vld [vmem:[%s262 + $0x108] sm:$0xff]
        %v622 = vld [vmem:[%s262 + $0x110] sm:$0xff]
        %v623 = vld [vmem:[%s262 + $0x120] sm:$0xff]
        %v624 = vld [vmem:[%s262 + $0x128] sm:$0xff]
        %v625 = vld [vmem:[%s262 + $0x138] sm:$0xff]
        %v626 = vld [vmem:[%s262 + $0x140] sm:$0xff]
        %v627 = vld [vmem:[%s262 + $0x150] sm:$0xff]
        %v628 = vld [vmem:[%s262 + $0x158] sm:$0xff]
        %v629 = vld [vmem:[%s262 + $0x168] sm:$0xff]
        %v630 = vld [vmem:[%s262 + $0x170] sm:$0xff]
        %s631 = scalar_lea.vmem %s1, 4
        %v632 = vld [vmem:[%s631] sm:$0x1]
        %v633 = vlaneseq
        %v634 = vshrl.u32 %v633, 7
        %v635 = vsub.s32 0, %v634
        %v636 = vrot.slane %v632, %v635
        %v637 = vmul.f32 %v599, %v636
        %v638 = vmul.f32 %v600, %v636
        %v639 = vmul.f32 %v601, %v636
        %v640 = vmul.f32 %v602, %v636
        %v641 = vmul.f32 %v603, %v636
        %v642 = vmul.f32 %v604, %v636
        %v643 = vmul.f32 %v605, %v636
        %v644 = vmul.f32 %v606, %v636
        %v645 = vmul.f32 %v607, %v636
        %v646 = vmul.f32 %v608, %v636
        %v647 = vmul.f32 %v609, %v636
        %v648 = vmul.f32 %v610, %v636
        %v649 = vmul.f32 %v611, %v636
        %v650 = vmul.f32 %v612, %v636
        %v651 = vmul.f32 %v613, %v636
        %v652 = vmul.f32 %v614, %v636
        %v653 = vmul.f32 %v615, %v636
        %v654 = vmul.f32 %v616, %v636
        %v655 = vmul.f32 %v617, %v636
        %v656 = vmul.f32 %v618, %v636
        %v657 = vmul.f32 %v619, %v636
        %v658 = vmul.f32 %v620, %v636
        %v659 = vmul.f32 %v621, %v636
        %v660 = vmul.f32 %v622, %v636
        %v661 = vmul.f32 %v623, %v636
        %v662 = vmul.f32 %v624, %v636
        %v663 = vmul.f32 %v625, %v636
        %v664 = vmul.f32 %v626, %v636
        %v665 = vmul.f32 %v627, %v636
        %v666 = vmul.f32 %v628, %v636
        %v667 = vmul.f32 %v629, %v636
        %v668 = vmul.f32 %v630, %v636
        %v669 = vadd.f32 %v567, %v637
        %v670 = vadd.f32 %v568, %v638
        %v671 = vadd.f32 %v569, %v639
        %v672 = vadd.f32 %v570, %v640
        %v673 = vadd.f32 %v571, %v641
        %v674 = vadd.f32 %v572, %v642
        %v675 = vadd.f32 %v573, %v643
        %v676 = vadd.f32 %v574, %v644
        %v677 = vadd.f32 %v575, %v645
        %v678 = vadd.f32 %v576, %v646
        %v679 = vadd.f32 %v577, %v647
        %v680 = vadd.f32 %v578, %v648
        %v681 = vadd.f32 %v579, %v649
        %v682 = vadd.f32 %v580, %v650
        %v683 = vadd.f32 %v581, %v651
        %v684 = vadd.f32 %v582, %v652
        %v685 = vadd.f32 %v583, %v653
        %v686 = vadd.f32 %v584, %v654
        %v687 = vadd.f32 %v585, %v655
        %v688 = vadd.f32 %v586, %v656
        %v689 = vadd.f32 %v587, %v657
        %v690 = vadd.f32 %v588, %v658
        %v691 = vadd.f32 %v589, %v659
        %v692 = vadd.f32 %v590, %v660
        %v693 = vadd.f32 %v591, %v661
        %v694 = vadd.f32 %v592, %v662
        %v695 = vadd.f32 %v593, %v663
        %v696 = vadd.f32 %v594, %v664
        %v697 = vadd.f32 %v595, %v665
        %v698 = vadd.f32 %v596, %v666
        %v699 = vadd.f32 %v597, %v667
        %v700 = vadd.f32 %v598, %v668
        %v701 = vld [vmem:[%s262 + $0x1] sm:$0xff]
        %v702 = vld [vmem:[%s262 + $0x9] sm:$0xff]
        %v703 = vld [vmem:[%s262 + $0x19] sm:$0xff]
        %v704 = vld [vmem:[%s262 + $0x21] sm:$0xff]
        %v705 = vld [vmem:[%s262 + $0x31] sm:$0xff]
        %v706 = vld [vmem:[%s262 + $0x39] sm:$0xff]
        %v707 = vld [vmem:[%s262 + $0x49] sm:$0xff]
        %v708 = vld [vmem:[%s262 + $0x51] sm:$0xff]
        %v709 = vld [vmem:[%s262 + $0x61] sm:$0xff]
        %v710 = vld [vmem:[%s262 + $0x69] sm:$0xff]
        %v711 = vld [vmem:[%s262 + $0x79] sm:$0xff]
        %v712 = vld [vmem:[%s262 + $0x81] sm:$0xff]
        %v713 = vld [vmem:[%s262 + $0x91] sm:$0xff]
        %v714 = vld [vmem:[%s262 + $0x99] sm:$0xff]
        %v715 = vld [vmem:[%s262 + $0xa9] sm:$0xff]
        %v716 = vld [vmem:[%s262 + $0xb1] sm:$0xff]
        %v717 = vld [vmem:[%s262 + $0xc1] sm:$0xff]
        %v718 = vld [vmem:[%s262 + $0xc9] sm:$0xff]
        %v719 = vld [vmem:[%s262 + $0xd9] sm:$0xff]
        %v720 = vld [vmem:[%s262 + $0xe1] sm:$0xff]
        %v721 = vld [vmem:[%s262 + $0xf1] sm:$0xff]
        %v722 = vld [vmem:[%s262 + $0xf9] sm:$0xff]
        %v723 = vld [vmem:[%s262 + $0x109] sm:$0xff]
        %v724 = vld [vmem:[%s262 + $0x111] sm:$0xff]
        %v725 = vld [vmem:[%s262 + $0x121] sm:$0xff]
        %v726 = vld [vmem:[%s262 + $0x129] sm:$0xff]
        %v727 = vld [vmem:[%s262 + $0x139] sm:$0xff]
        %v728 = vld [vmem:[%s262 + $0x141] sm:$0xff]
        %v729 = vld [vmem:[%s262 + $0x151] sm:$0xff]
        %v730 = vld [vmem:[%s262 + $0x159] sm:$0xff]
        %v731 = vld [vmem:[%s262 + $0x169] sm:$0xff]
        %v732 = vld [vmem:[%s262 + $0x171] sm:$0xff]
        %v733 = vld [vmem:[%s631 + $0x1] sm:$0x1]
        %v734 = vlaneseq
        %v735 = vshrl.u32 %v734, 7
        %v736 = vsub.s32 0, %v735
        %v737 = vrot.slane %v733, %v736
        %v738 = vmul.f32 %v701, %v737
        %v739 = vmul.f32 %v702, %v737
        %v740 = vmul.f32 %v703, %v737
        %v741 = vmul.f32 %v704, %v737
        %v742 = vmul.f32 %v705, %v737
        %v743 = vmul.f32 %v706, %v737
        %v744 = vmul.f32 %v707, %v737
        %v745 = vmul.f32 %v708, %v737
        %v746 = vmul.f32 %v709, %v737
        %v747 = vmul.f32 %v710, %v737
        %v748 = vmul.f32 %v711, %v737
        %v749 = vmul.f32 %v712, %v737
        %v750 = vmul.f32 %v713, %v737
        %v751 = vmul.f32 %v714, %v737
        %v752 = vmul.f32 %v715, %v737
        %v753 = vmul.f32 %v716, %v737
        %v754 = vmul.f32 %v717, %v737
        %v755 = vmul.f32 %v718, %v737
        %v756 = vmul.f32 %v719, %v737
        %v757 = vmul.f32 %v720, %v737
        %v758 = vmul.f32 %v721, %v737
        %v759 = vmul.f32 %v722, %v737
        %v760 = vmul.f32 %v723, %v737
        %v761 = vmul.f32 %v724, %v737
        %v762 = vmul.f32 %v725, %v737
        %v763 = vmul.f32 %v726, %v737
        %v764 = vmul.f32 %v727, %v737
        %v765 = vmul.f32 %v728, %v737
        %v766 = vmul.f32 %v729, %v737
        %v767 = vmul.f32 %v730, %v737
        %v768 = vmul.f32 %v731, %v737
        %v769 = vmul.f32 %v732, %v737
        %v770 = vadd.f32 %v669, %v738
        %v771 = vadd.f32 %v670, %v739
        %v772 = vadd.f32 %v671, %v740
        %v773 = vadd.f32 %v672, %v741
        %v774 = vadd.f32 %v673, %v742
        %v775 = vadd.f32 %v674, %v743
        %v776 = vadd.f32 %v675, %v744
        %v777 = vadd.f32 %v676, %v745
        %v778 = vadd.f32 %v677, %v746
        %v779 = vadd.f32 %v678, %v747
        %v780 = vadd.f32 %v679, %v748
        %v781 = vadd.f32 %v680, %v749
        %v782 = vadd.f32 %v681, %v750
        %v783 = vadd.f32 %v682, %v751
        %v784 = vadd.f32 %v683, %v752
        %v785 = vadd.f32 %v684, %v753
        %v786 = vadd.f32 %v685, %v754
        %v787 = vadd.f32 %v686, %v755
        %v788 = vadd.f32 %v687, %v756
        %v789 = vadd.f32 %v688, %v757
        %v790 = vadd.f32 %v689, %v758
        %v791 = vadd.f32 %v690, %v759
        %v792 = vadd.f32 %v691, %v760
        %v793 = vadd.f32 %v692, %v761
        %v794 = vadd.f32 %v693, %v762
        %v795 = vadd.f32 %v694, %v763
        %v796 = vadd.f32 %v695, %v764
        %v797 = vadd.f32 %v696, %v765
        %v798 = vadd.f32 %v697, %v766
        %v799 = vadd.f32 %v698, %v767
        %v800 = vadd.f32 %v699, %v768
        %v801 = vadd.f32 %v700, %v769
        %v802 = vld [vmem:[%s262 + $0x2] sm:$0xff]
        %v803 = vld [vmem:[%s262 + $0xa] sm:$0xff]
        %v804 = vld [vmem:[%s262 + $0x1a] sm:$0xff]
        %v805 = vld [vmem:[%s262 + $0x22] sm:$0xff]
        %v806 = vld [vmem:[%s262 + $0x32] sm:$0xff]
        %v807 = vld [vmem:[%s262 + $0x3a] sm:$0xff]
        %v808 = vld [vmem:[%s262 + $0x4a] sm:$0xff]
        %v809 = vld [vmem:[%s262 + $0x52] sm:$0xff]
        %v810 = vld [vmem:[%s262 + $0x62] sm:$0xff]
        %v811 = vld [vmem:[%s262 + $0x6a] sm:$0xff]
        %v812 = vld [vmem:[%s262 + $0x7a] sm:$0xff]
        %v813 = vld [vmem:[%s262 + $0x82] sm:$0xff]
        %v814 = vld [vmem:[%s262 + $0x92] sm:$0xff]
        %v815 = vld [vmem:[%s262 + $0x9a] sm:$0xff]
        %v816 = vld [vmem:[%s262 + $0xaa] sm:$0xff]
        %v817 = vld [vmem:[%s262 + $0xb2] sm:$0xff]
        %v818 = vld [vmem:[%s262 + $0xc2] sm:$0xff]
        %v819 = vld [vmem:[%s262 + $0xca] sm:$0xff]
        %v820 = vld [vmem:[%s262 + $0xda] sm:$0xff]
        %v821 = vld [vmem:[%s262 + $0xe2] sm:$0xff]
        %v822 = vld [vmem:[%s262 + $0xf2] sm:$0xff]
        %v823 = vld [vmem:[%s262 + $0xfa] sm:$0xff]
        %v824 = vld [vmem:[%s262 + $0x10a] sm:$0xff]
        %v825 = vld [vmem:[%s262 + $0x112] sm:$0xff]
        %v826 = vld [vmem:[%s262 + $0x122] sm:$0xff]
        %v827 = vld [vmem:[%s262 + $0x12a] sm:$0xff]
        %v828 = vld [vmem:[%s262 + $0x13a] sm:$0xff]
        %v829 = vld [vmem:[%s262 + $0x142] sm:$0xff]
        %v830 = vld [vmem:[%s262 + $0x152] sm:$0xff]
        %v831 = vld [vmem:[%s262 + $0x15a] sm:$0xff]
        %v832 = vld [vmem:[%s262 + $0x16a] sm:$0xff]
        %v833 = vld [vmem:[%s262 + $0x172] sm:$0xff]
        %v834 = vld [vmem:[%s631 + $0x2] sm:$0x1]
        %v835 = vlaneseq
        %v836 = vshrl.u32 %v835, 7
        %v837 = vsub.s32 0, %v836
        %v838 = vrot.slane %v834, %v837
        %v839 = vmul.f32 %v802, %v838
        %v840 = vmul.f32 %v803, %v838
        %v841 = vmul.f32 %v804, %v838
        %v842 = vmul.f32 %v805, %v838
        %v843 = vmul.f32 %v806, %v838
        %v844 = vmul.f32 %v807, %v838
        %v845 = vmul.f32 %v808, %v838
        %v846 = vmul.f32 %v809, %v838
        %v847 = vmul.f32 %v810, %v838
        %v848 = vmul.f32 %v811, %v838
        %v849 = vmul.f32 %v812, %v838
        %v850 = vmul.f32 %v813, %v838
        %v851 = vmul.f32 %v814, %v838
        %v852 = vmul.f32 %v815, %v838
        %v853 = vmul.f32 %v816, %v838
        %v854 = vmul.f32 %v817, %v838
        %v855 = vmul.f32 %v818, %v838
        %v856 = vmul.f32 %v819, %v838
        %v857 = vmul.f32 %v820, %v838
        %v858 = vmul.f32 %v821, %v838
        %v859 = vmul.f32 %v822, %v838
        %v860 = vmul.f32 %v823, %v838
        %v861 = vmul.f32 %v824, %v838
        %v862 = vmul.f32 %v825, %v838
        %v863 = vmul.f32 %v826, %v838
        %v864 = vmul.f32 %v827, %v838
        %v865 = vmul.f32 %v828, %v838
        %v866 = vmul.f32 %v829, %v838
        %v867 = vmul.f32 %v830, %v838
        %v868 = vmul.f32 %v831, %v838
        %v869 = vmul.f32 %v832, %v838
        %v870 = vmul.f32 %v833, %v838
        %v871 = vadd.f32 %v770, %v839
        %v872 = vadd.f32 %v771, %v840
        %v873 = vadd.f32 %v772, %v841
        %v874 = vadd.f32 %v773, %v842
        %v875 = vadd.f32 %v774, %v843
        %v876 = vadd.f32 %v775, %v844
        %v877 = vadd.f32 %v776, %v845
        %v878 = vadd.f32 %v777, %v846
        %v879 = vadd.f32 %v778, %v847
        %v880 = vadd.f32 %v779, %v848
        %v881 = vadd.f32 %v780, %v849
        %v882 = vadd.f32 %v781, %v850
        %v883 = vadd.f32 %v782, %v851
        %v884 = vadd.f32 %v783, %v852
        %v885 = vadd.f32 %v784, %v853
        %v886 = vadd.f32 %v785, %v854
        %v887 = vadd.f32 %v786, %v855
        %v888 = vadd.f32 %v787, %v856
        %v889 = vadd.f32 %v788, %v857
        %v890 = vadd.f32 %v789, %v858
        %v891 = vadd.f32 %v790, %v859
        %v892 = vadd.f32 %v791, %v860
        %v893 = vadd.f32 %v792, %v861
        %v894 = vadd.f32 %v793, %v862
        %v895 = vadd.f32 %v794, %v863
        %v896 = vadd.f32 %v795, %v864
        %v897 = vadd.f32 %v796, %v865
        %v898 = vadd.f32 %v797, %v866
        %v899 = vadd.f32 %v798, %v867
        %v900 = vadd.f32 %v799, %v868
        %v901 = vadd.f32 %v800, %v869
        %v902 = vadd.f32 %v801, %v870
        %s903 = scalar_lea.vmem [#allocation2], 48
        %v904 = vld [vmem:[%s903] sm:$0xff]
        %v905 = vld [vmem:[%s903 + $0x8] sm:$0xff]
        %v906 = vld [vmem:[%s903 + $0x18] sm:$0xff]
        %v907 = vld [vmem:[%s903 + $0x20] sm:$0xff]
        %v908 = vld [vmem:[%s903 + $0x30] sm:$0xff]
        %v909 = vld [vmem:[%s903 + $0x38] sm:$0xff]
        %v910 = vld [vmem:[%s903 + $0x48] sm:$0xff]
        %v911 = vld [vmem:[%s903 + $0x50] sm:$0xff]
        %v912 = vld [vmem:[%s903 + $0x60] sm:$0xff]
        %v913 = vld [vmem:[%s903 + $0x68] sm:$0xff]
        %v914 = vld [vmem:[%s903 + $0x78] sm:$0xff]
        %v915 = vld [vmem:[%s903 + $0x80] sm:$0xff]
        %v916 = vld [vmem:[%s903 + $0x90] sm:$0xff]
        %v917 = vld [vmem:[%s903 + $0x98] sm:$0xff]
        %v918 = vld [vmem:[%s903 + $0xa8] sm:$0xff]
        %v919 = vld [vmem:[%s903 + $0xb0] sm:$0xff]
        %v920 = vld [vmem:[%s903 + $0xc0] sm:$0xff]
        %v921 = vld [vmem:[%s903 + $0xc8] sm:$0xff]
        %v922 = vld [vmem:[%s903 + $0xd8] sm:$0xff]
        %v923 = vld [vmem:[%s903 + $0xe0] sm:$0xff]
        %v924 = vld [vmem:[%s903 + $0xf0] sm:$0xff]
        %v925 = vld [vmem:[%s903 + $0xf8] sm:$0xff]
        %v926 = vld [vmem:[%s903 + $0x108] sm:$0xff]
        %v927 = vld [vmem:[%s903 + $0x110] sm:$0xff]
        %v928 = vld [vmem:[%s903 + $0x120] sm:$0xff]
        %v929 = vld [vmem:[%s903 + $0x128] sm:$0xff]
        %v930 = vld [vmem:[%s903 + $0x138] sm:$0xff]
        %v931 = vld [vmem:[%s903 + $0x140] sm:$0xff]
        %v932 = vld [vmem:[%s903 + $0x150] sm:$0xff]
        %v933 = vld [vmem:[%s903 + $0x158] sm:$0xff]
        %v934 = vld [vmem:[%s903 + $0x168] sm:$0xff]
        %v935 = vld [vmem:[%s903 + $0x170] sm:$0xff]
        %s936 = scalar_lea.vmem %s1, 8
        %v937 = vld [vmem:[%s936] sm:$0x1]
        %v938 = vlaneseq
        %v939 = vshrl.u32 %v938, 7
        %v940 = vsub.s32 0, %v939
        %v941 = vrot.slane %v937, %v940
        %v942 = vmul.f32 %v904, %v941
        %v943 = vmul.f32 %v905, %v941
        %v944 = vmul.f32 %v906, %v941
        %v945 = vmul.f32 %v907, %v941
        %v946 = vmul.f32 %v908, %v941
        %v947 = vmul.f32 %v909, %v941
        %v948 = vmul.f32 %v910, %v941
        %v949 = vmul.f32 %v911, %v941
        %v950 = vmul.f32 %v912, %v941
        %v951 = vmul.f32 %v913, %v941
        %v952 = vmul.f32 %v914, %v941
        %v953 = vmul.f32 %v915, %v941
        %v954 = vmul.f32 %v916, %v941
        %v955 = vmul.f32 %v917, %v941
        %v956 = vmul.f32 %v918, %v941
        %v957 = vmul.f32 %v919, %v941
        %v958 = vmul.f32 %v920, %v941
        %v959 = vmul.f32 %v921, %v941
        %v960 = vmul.f32 %v922, %v941
        %v961 = vmul.f32 %v923, %v941
        %v962 = vmul.f32 %v924, %v941
        %v963 = vmul.f32 %v925, %v941
        %v964 = vmul.f32 %v926, %v941
        %v965 = vmul.f32 %v927, %v941
        %v966 = vmul.f32 %v928, %v941
        %v967 = vmul.f32 %v929, %v941
        %v968 = vmul.f32 %v930, %v941
        %v969 = vmul.f32 %v931, %v941
        %v970 = vmul.f32 %v932, %v941
        %v971 = vmul.f32 %v933, %v941
        %v972 = vmul.f32 %v934, %v941
        %v973 = vmul.f32 %v935, %v941
        %v974 = vadd.f32 %v871, %v942
        %v975 = vadd.f32 %v872, %v943
        %v976 = vadd.f32 %v873, %v944
        %v977 = vadd.f32 %v874, %v945
        %v978 = vadd.f32 %v875, %v946
        %v979 = vadd.f32 %v876, %v947
        %v980 = vadd.f32 %v877, %v948
        %v981 = vadd.f32 %v878, %v949
        %v982 = vadd.f32 %v879, %v950
        %v983 = vadd.f32 %v880, %v951
        %v984 = vadd.f32 %v881, %v952
        %v985 = vadd.f32 %v882, %v953
        %v986 = vadd.f32 %v883, %v954
        %v987 = vadd.f32 %v884, %v955
        %v988 = vadd.f32 %v885, %v956
        %v989 = vadd.f32 %v886, %v957
        %v990 = vadd.f32 %v887, %v958
        %v991 = vadd.f32 %v888, %v959
        %v992 = vadd.f32 %v889, %v960
        %v993 = vadd.f32 %v890, %v961
        %v994 = vadd.f32 %v891, %v962
        %v995 = vadd.f32 %v892, %v963
        %v996 = vadd.f32 %v893, %v964
        %v997 = vadd.f32 %v894, %v965
        %v998 = vadd.f32 %v895, %v966
        %v999 = vadd.f32 %v896, %v967
        %v1000 = vadd.f32 %v897, %v968
        %v1001 = vadd.f32 %v898, %v969
        %v1002 = vadd.f32 %v899, %v970
        %v1003 = vadd.f32 %v900, %v971
        %v1004 = vadd.f32 %v901, %v972
        %v1005 = vadd.f32 %v902, %v973
        %v1006 = vld [vmem:[%s903 + $0x1] sm:$0xff]
        %v1007 = vld [vmem:[%s903 + $0x9] sm:$0xff]
        %v1008 = vld [vmem:[%s903 + $0x19] sm:$0xff]
        %v1009 = vld [vmem:[%s903 + $0x21] sm:$0xff]
        %v1010 = vld [vmem:[%s903 + $0x31] sm:$0xff]
        %v1011 = vld [vmem:[%s903 + $0x39] sm:$0xff]
        %v1012 = vld [vmem:[%s903 + $0x49] sm:$0xff]
        %v1013 = vld [vmem:[%s903 + $0x51] sm:$0xff]
        %v1014 = vld [vmem:[%s903 + $0x61] sm:$0xff]
        %v1015 = vld [vmem:[%s903 + $0x69] sm:$0xff]
        %v1016 = vld [vmem:[%s903 + $0x79] sm:$0xff]
        %v1017 = vld [vmem:[%s903 + $0x81] sm:$0xff]
        %v1018 = vld [vmem:[%s903 + $0x91] sm:$0xff]
        %v1019 = vld [vmem:[%s903 + $0x99] sm:$0xff]
        %v1020 = vld [vmem:[%s903 + $0xa9] sm:$0xff]
        %v1021 = vld [vmem:[%s903 + $0xb1] sm:$0xff]
        %v1022 = vld [vmem:[%s903 + $0xc1] sm:$0xff]
        %v1023 = vld [vmem:[%s903 + $0xc9] sm:$0xff]
        %v1024 = vld [vmem:[%s903 + $0xd9] sm:$0xff]
        %v1025 = vld [vmem:[%s903 + $0xe1] sm:$0xff]
        %v1026 = vld [vmem:[%s903 + $0xf1] sm:$0xff]
        %v1027 = vld [vmem:[%s903 + $0xf9] sm:$0xff]
        %v1028 = vld [vmem:[%s903 + $0x109] sm:$0xff]
        %v1029 = vld [vmem:[%s903 + $0x111] sm:$0xff]
        %v1030 = vld [vmem:[%s903 + $0x121] sm:$0xff]
        %v1031 = vld [vmem:[%s903 + $0x129] sm:$0xff]
        %v1032 = vld [vmem:[%s903 + $0x139] sm:$0xff]
        %v1033 = vld [vmem:[%s903 + $0x141] sm:$0xff]
        %v1034 = vld [vmem:[%s903 + $0x151] sm:$0xff]
        %v1035 = vld [vmem:[%s903 + $0x159] sm:$0xff]
        %v1036 = vld [vmem:[%s903 + $0x169] sm:$0xff]
        %v1037 = vld [vmem:[%s903 + $0x171] sm:$0xff]
        %v1038 = vld [vmem:[%s936 + $0x1] sm:$0x1]
        %v1039 = vlaneseq
        %v1040 = vshrl.u32 %v1039, 7
        %v1041 = vsub.s32 0, %v1040
        %v1042 = vrot.slane %v1038, %v1041
        %v1043 = vmul.f32 %v1006, %v1042
        %v1044 = vmul.f32 %v1007, %v1042
        %v1045 = vmul.f32 %v1008, %v1042
        %v1046 = vmul.f32 %v1009, %v1042
        %v1047 = vmul.f32 %v1010, %v1042
        %v1048 = vmul.f32 %v1011, %v1042
        %v1049 = vmul.f32 %v1012, %v1042
        %v1050 = vmul.f32 %v1013, %v1042
        %v1051 = vmul.f32 %v1014, %v1042
        %v1052 = vmul.f32 %v1015, %v1042
        %v1053 = vmul.f32 %v1016, %v1042
        %v1054 = vmul.f32 %v1017, %v1042
        %v1055 = vmul.f32 %v1018, %v1042
        %v1056 = vmul.f32 %v1019, %v1042
        %v1057 = vmul.f32 %v1020, %v1042
        %v1058 = vmul.f32 %v1021, %v1042
        %v1059 = vmul.f32 %v1022, %v1042
        %v1060 = vmul.f32 %v1023, %v1042
        %v1061 = vmul.f32 %v1024, %v1042
        %v1062 = vmul.f32 %v1025, %v1042
        %v1063 = vmul.f32 %v1026, %v1042
        %v1064 = vmul.f32 %v1027, %v1042
        %v1065 = vmul.f32 %v1028, %v1042
        %v1066 = vmul.f32 %v1029, %v1042
        %v1067 = vmul.f32 %v1030, %v1042
        %v1068 = vmul.f32 %v1031, %v1042
        %v1069 = vmul.f32 %v1032, %v1042
        %v1070 = vmul.f32 %v1033, %v1042
        %v1071 = vmul.f32 %v1034, %v1042
        %v1072 = vmul.f32 %v1035, %v1042
        %v1073 = vmul.f32 %v1036, %v1042
        %v1074 = vmul.f32 %v1037, %v1042
        %v1075 = vadd.f32 %v974, %v1043
        %v1076 = vadd.f32 %v975, %v1044
        %v1077 = vadd.f32 %v976, %v1045
        %v1078 = vadd.f32 %v977, %v1046
        %v1079 = vadd.f32 %v978, %v1047
        %v1080 = vadd.f32 %v979, %v1048
        %v1081 = vadd.f32 %v980, %v1049
        %v1082 = vadd.f32 %v981, %v1050
        %v1083 = vadd.f32 %v982, %v1051
        %v1084 = vadd.f32 %v983, %v1052
        %v1085 = vadd.f32 %v984, %v1053
        %v1086 = vadd.f32 %v985, %v1054
        %v1087 = vadd.f32 %v986, %v1055
        %v1088 = vadd.f32 %v987, %v1056
        %v1089 = vadd.f32 %v988, %v1057
        %v1090 = vadd.f32 %v989, %v1058
        %v1091 = vadd.f32 %v990, %v1059
        %v1092 = vadd.f32 %v991, %v1060
        %v1093 = vadd.f32 %v992, %v1061
        %v1094 = vadd.f32 %v993, %v1062
        %v1095 = vadd.f32 %v994, %v1063
        %v1096 = vadd.f32 %v995, %v1064
        %v1097 = vadd.f32 %v996, %v1065
        %v1098 = vadd.f32 %v997, %v1066
        %v1099 = vadd.f32 %v998, %v1067
        %v1100 = vadd.f32 %v999, %v1068
        %v1101 = vadd.f32 %v1000, %v1069
        %v1102 = vadd.f32 %v1001, %v1070
        %v1103 = vadd.f32 %v1002, %v1071
        %v1104 = vadd.f32 %v1003, %v1072
        %v1105 = vadd.f32 %v1004, %v1073
        %v1106 = vadd.f32 %v1005, %v1074
        %v1107 = vld [vmem:[%s903 + $0x2] sm:$0xff]
        %v1108 = vld [vmem:[%s903 + $0xa] sm:$0xff]
        %v1109 = vld [vmem:[%s903 + $0x1a] sm:$0xff]
        %v1110 = vld [vmem:[%s903 + $0x22] sm:$0xff]
        %v1111 = vld [vmem:[%s903 + $0x32] sm:$0xff]
        %v1112 = vld [vmem:[%s903 + $0x3a] sm:$0xff]
        %v1113 = vld [vmem:[%s903 + $0x4a] sm:$0xff]
        %v1114 = vld [vmem:[%s903 + $0x52] sm:$0xff]
        %v1115 = vld [vmem:[%s903 + $0x62] sm:$0xff]
        %v1116 = vld [vmem:[%s903 + $0x6a] sm:$0xff]
        %v1117 = vld [vmem:[%s903 + $0x7a] sm:$0xff]
        %v1118 = vld [vmem:[%s903 + $0x82] sm:$0xff]
        %v1119 = vld [vmem:[%s903 + $0x92] sm:$0xff]
        %v1120 = vld [vmem:[%s903 + $0x9a] sm:$0xff]
        %v1121 = vld [vmem:[%s903 + $0xaa] sm:$0xff]
        %v1122 = vld [vmem:[%s903 + $0xb2] sm:$0xff]
        %v1123 = vld [vmem:[%s903 + $0xc2] sm:$0xff]
        %v1124 = vld [vmem:[%s903 + $0xca] sm:$0xff]
        %v1125 = vld [vmem:[%s903 + $0xda] sm:$0xff]
        %v1126 = vld [vmem:[%s903 + $0xe2] sm:$0xff]
        %v1127 = vld [vmem:[%s903 + $0xf2] sm:$0xff]
        %v1128 = vld [vmem:[%s903 + $0xfa] sm:$0xff]
        %v1129 = vld [vmem:[%s903 + $0x10a] sm:$0xff]
        %v1130 = vld [vmem:[%s903 + $0x112] sm:$0xff]
        %v1131 = vld [vmem:[%s903 + $0x122] sm:$0xff]
        %v1132 = vld [vmem:[%s903 + $0x12a] sm:$0xff]
        %v1133 = vld [vmem:[%s903 + $0x13a] sm:$0xff]
        %v1134 = vld [vmem:[%s903 + $0x142] sm:$0xff]
        %v1135 = vld [vmem:[%s903 + $0x152] sm:$0xff]
        %v1136 = vld [vmem:[%s903 + $0x15a] sm:$0xff]
        %v1137 = vld [vmem:[%s903 + $0x16a] sm:$0xff]
        %v1138 = vld [vmem:[%s903 + $0x172] sm:$0xff]
        %v1139 = vld [vmem:[%s936 + $0x2] sm:$0x1]
        %v1140 = vlaneseq
        %v1141 = vshrl.u32 %v1140, 7
        %v1142 = vsub.s32 0, %v1141
        %v1143 = vrot.slane %v1139, %v1142
        %v1144 = vmul.f32 %v1107, %v1143
        %v1145 = vmul.f32 %v1108, %v1143
        %v1146 = vmul.f32 %v1109, %v1143
        %v1147 = vmul.f32 %v1110, %v1143
        %v1148 = vmul.f32 %v1111, %v1143
        %v1149 = vmul.f32 %v1112, %v1143
        %v1150 = vmul.f32 %v1113, %v1143
        %v1151 = vmul.f32 %v1114, %v1143
        %v1152 = vmul.f32 %v1115, %v1143
        %v1153 = vmul.f32 %v1116, %v1143
        %v1154 = vmul.f32 %v1117, %v1143
        %v1155 = vmul.f32 %v1118, %v1143
        %v1156 = vmul.f32 %v1119, %v1143
        %v1157 = vmul.f32 %v1120, %v1143
        %v1158 = vmul.f32 %v1121, %v1143
        %v1159 = vmul.f32 %v1122, %v1143
        %v1160 = vmul.f32 %v1123, %v1143
        %v1161 = vmul.f32 %v1124, %v1143
        %v1162 = vmul.f32 %v1125, %v1143
        %v1163 = vmul.f32 %v1126, %v1143
        %v1164 = vmul.f32 %v1127, %v1143
        %v1165 = vmul.f32 %v1128, %v1143
        %v1166 = vmul.f32 %v1129, %v1143
        %v1167 = vmul.f32 %v1130, %v1143
        %v1168 = vmul.f32 %v1131, %v1143
        %v1169 = vmul.f32 %v1132, %v1143
        %v1170 = vmul.f32 %v1133, %v1143
        %v1171 = vmul.f32 %v1134, %v1143
        %v1172 = vmul.f32 %v1135, %v1143
        %v1173 = vmul.f32 %v1136, %v1143
        %v1174 = vmul.f32 %v1137, %v1143
        %v1175 = vmul.f32 %v1138, %v1143
        %v1176 = vadd.f32 %v1075, %v1144
        %v1177 = vadd.f32 %v1076, %v1145
        %v1178 = vadd.f32 %v1077, %v1146
        %v1179 = vadd.f32 %v1078, %v1147
        %v1180 = vadd.f32 %v1079, %v1148
        %v1181 = vadd.f32 %v1080, %v1149
        %v1182 = vadd.f32 %v1081, %v1150
        %v1183 = vadd.f32 %v1082, %v1151
        %v1184 = vadd.f32 %v1083, %v1152
        %v1185 = vadd.f32 %v1084, %v1153
        %v1186 = vadd.f32 %v1085, %v1154
        %v1187 = vadd.f32 %v1086, %v1155
        %v1188 = vadd.f32 %v1087, %v1156
        %v1189 = vadd.f32 %v1088, %v1157
        %v1190 = vadd.f32 %v1089, %v1158
        %v1191 = vadd.f32 %v1090, %v1159
        %v1192 = vadd.f32 %v1091, %v1160
        %v1193 = vadd.f32 %v1092, %v1161
        %v1194 = vadd.f32 %v1093, %v1162
        %v1195 = vadd.f32 %v1094, %v1163
        %v1196 = vadd.f32 %v1095, %v1164
        %v1197 = vadd.f32 %v1096, %v1165
        %v1198 = vadd.f32 %v1097, %v1166
        %v1199 = vadd.f32 %v1098, %v1167
        %v1200 = vadd.f32 %v1099, %v1168
        %v1201 = vadd.f32 %v1100, %v1169
        %v1202 = vadd.f32 %v1101, %v1170
        %v1203 = vadd.f32 %v1102, %v1171
        %v1204 = vadd.f32 %v1103, %v1172
        %v1205 = vadd.f32 %v1104, %v1173
        %v1206 = vadd.f32 %v1105, %v1174
        %v1207 = vadd.f32 %v1106, %v1175
        %v1208 = vpack.c.bf16 %v1177, %v1176
        %v1209 = vpack.c.bf16 %v1179, %v1178
        %v1210 = vpack.c.bf16 %v1181, %v1180
        %v1211 = vpack.c.bf16 %v1183, %v1182
        %v1212 = vpack.c.bf16 %v1185, %v1184
        %v1213 = vpack.c.bf16 %v1187, %v1186
        %v1214 = vpack.c.bf16 %v1189, %v1188
        %v1215 = vpack.c.bf16 %v1191, %v1190
        %v1216 = vpack.c.bf16 %v1193, %v1192
        %v1217 = vpack.c.bf16 %v1195, %v1194
        %v1218 = vpack.c.bf16 %v1197, %v1196
        %v1219 = vpack.c.bf16 %v1199, %v1198
        %v1220 = vpack.c.bf16 %v1201, %v1200
        %v1221 = vpack.c.bf16 %v1203, %v1202
        %v1222 = vpack.c.bf16 %v1205, %v1204
        %v1223 = vpack.c.bf16 %v1207, %v1206
        %v1224 = vld [vmem:[%s2] sm:$0xf]
        %v1226 = vsel %vm263, %v1208, 0
        %v1229 = vsel %vm263, %v1209, 0
        %v1232 = vsel %vm263, %v1210, 0
        %v1235 = vsel %vm263, %v1211, 0
        %v1238 = vsel %vm263, %v1212, 0
        %v1241 = vsel %vm263, %v1213, 0
        %v1244 = vsel %vm263, %v1214, 0
        %v1247 = vsel %vm263, %v1215, 0
        %v1250 = vsel %vm263, %v1216, 0
        %v1253 = vsel %vm263, %v1217, 0
        %v1256 = vsel %vm263, %v1218, 0
        %v1259 = vsel %vm263, %v1219, 0
        %v1262 = vsel %vm263, %v1220, 0
        %v1265 = vsel %vm263, %v1221, 0
        %v1268 = vsel %vm263, %v1222, 0
        %v1271 = vsel %vm263, %v1223, 0
        %vm1273 = vcmask 1043456
        %v1275 = vsel %vm1273, %v1224, 0
        %1277 = vmatprep.subr.bf16.mxu0 0
        %1278 = vmatpush1.bf16.msra.mxu0 %v1275
        %1279 = vmatprep.subr.bf16.mxu0 0
        %1280 = vmatpush1.bf16.msra.mxu0 0
        %1281 = vmatprep.subr.bf16.mxu0 0
        %1282 = vmatpush1.bf16.msra.mxu0 0
        %1283 = vmatprep.subr.bf16.mxu0 0
        %1284 = vmatpush1.bf16.msra.mxu0 0
        %1285 = vmatprep.subr.bf16.mxu0 0
        %1286 = vmatpush1.bf16.msra.mxu0 0
        %1287 = vmatprep.subr.bf16.mxu0 0
        %1288 = vmatpush1.bf16.msra.mxu0 0
        %1289 = vmatprep.subr.bf16.mxu0 0
        %1290 = vmatpush1.bf16.msra.mxu0 0
        %1291 = vmatprep.subr.bf16.mxu0 0
        %1292 = vmatpush1.bf16.msra.mxu0 0
        %1293 = vmatprep.subr.bf16.mxu0 0
        %1294 = vmatpush1.bf16.msra.mxu0 0
        %1295 = vmatprep.subr.bf16.mxu0 0
        %1296 = vmatpush1.bf16.msra.mxu0 0
        %1297 = vmatprep.subr.bf16.mxu0 0
        %1298 = vmatpush1.bf16.msra.mxu0 0
        %1299 = vmatprep.subr.bf16.mxu0 0
        %1300 = vmatpush1.bf16.msra.mxu0 0
        %1301 = vmatprep.subr.bf16.mxu0 0
        %1302 = vmatpush1.bf16.msra.mxu0 0
        %1303 = vmatprep.subr.bf16.mxu0 0
        %1304 = vmatpush1.bf16.msra.mxu0 0
        %1305 = vmatprep.subr.bf16.mxu0 0
        %1306 = vmatpush1.bf16.msra.mxu0 0
        %1307 = vmatprep.subr.bf16.mxu0 0
        %1308 = vmatpush1.bf16.msra.mxu0 0
        %1309 = vmatprep.mubr.bf16.mxu0 0
        %1310 = vmatmul.mubr.bf16.gmra.mrb[0].mxu0 %v1226
        %v1311 = vpop.f32.mrb[0].mxu0
        %v1312 = vadd.f32 0.0, %v1311
        %v1313 = vpop.f32.mrb[0].mxu0
        %v1314 = vpop.f32.mrb[0].mxu0
        %v1315 = vadd.f32 0.0, %v1314
        %v1316 = vpop.f32.mrb[0].mxu0
        %1317 = vmatprep.mubr.bf16.mxu0 0
        %1318 = vmatmul.mubr.bf16.gmra.mrb[0].mxu0 %v1229
        %v1319 = vpop.f32.mrb[0].mxu0
        %v1320 = vadd.f32 0.0, %v1319
        %v1321 = vpop.f32.mrb[0].mxu0
        %v1322 = vpop.f32.mrb[0].mxu0
        %v1323 = vadd.f32 0.0, %v1322
        %v1324 = vpop.f32.mrb[0].mxu0
        %1325 = vmatprep.mubr.bf16.mxu0 0
        %1326 = vmatmul.mubr.bf16.gmra.mrb[0].mxu0 %v1232
        %v1327 = vpop.f32.mrb[0].mxu0
        %v1328 = vadd.f32 0.0, %v1327
        %v1329 = vpop.f32.mrb[0].mxu0
        %v1330 = vpop.f32.mrb[0].mxu0
        %v1331 = vadd.f32 0.0, %v1330
        %v1332 = vpop.f32.mrb[0].mxu0
        %1333 = vmatprep.mubr.bf16.mxu0 0
        %1334 = vmatmul.mubr.bf16.gmra.mrb[0].mxu0 %v1235
        %v1335 = vpop.f32.mrb[0].mxu0
        %v1336 = vadd.f32 0.0, %v1335
        %v1337 = vpop.f32.mrb[0].mxu0
        %v1338 = vpop.f32.mrb[0].mxu0
        %v1339 = vadd.f32 0.0, %v1338
        %v1340 = vpop.f32.mrb[0].mxu0
        %1341 = vmatprep.mubr.bf16.mxu0 0
        %1342 = vmatmul.mubr.bf16.gmra.mrb[0].mxu0 %v1238
        %v1343 = vpop.f32.mrb[0].mxu0
        %v1344 = vadd.f32 0.0, %v1343
        %v1345 = vpop.f32.mrb[0].mxu0
        %v1346 = vpop.f32.mrb[0].mxu0
        %v1347 = vadd.f32 0.0, %v1346
        %v1348 = vpop.f32.mrb[0].mxu0
        %1349 = vmatprep.mubr.bf16.mxu0 0
        %1350 = vmatmul.mubr.bf16.gmra.mrb[0].mxu0 %v1241
        %v1351 = vpop.f32.mrb[0].mxu0
        %v1352 = vadd.f32 0.0, %v1351
        %v1353 = vpop.f32.mrb[0].mxu0
        %v1354 = vpop.f32.mrb[0].mxu0
        %v1355 = vadd.f32 0.0, %v1354
        %v1356 = vpop.f32.mrb[0].mxu0
        %1357 = vmatprep.mubr.bf16.mxu0 0
        %1358 = vmatmul.mubr.bf16.gmra.mrb[0].mxu0 %v1244
        %v1359 = vpop.f32.mrb[0].mxu0
        %v1360 = vadd.f32 0.0, %v1359
        %v1361 = vpop.f32.mrb[0].mxu0
        %v1362 = vpop.f32.mrb[0].mxu0
        %v1363 = vadd.f32 0.0, %v1362
        %v1364 = vpop.f32.mrb[0].mxu0
        %1365 = vmatprep.mubr.bf16.mxu0 0
        %1366 = vmatmul.mubr.bf16.gmra.mrb[0].mxu0 %v1247
        %v1367 = vpop.f32.mrb[0].mxu0
        %v1368 = vadd.f32 0.0, %v1367
        %v1369 = vpop.f32.mrb[0].mxu0
        %v1370 = vpop.f32.mrb[0].mxu0
        %v1371 = vadd.f32 0.0, %v1370
        %v1372 = vpop.f32.mrb[0].mxu0
        %1373 = vmatprep.mubr.bf16.mxu0 0
        %1374 = vmatmul.mubr.bf16.gmra.mrb[0].mxu0 %v1250
        %v1375 = vpop.f32.mrb[0].mxu0
        %v1376 = vadd.f32 0.0, %v1375
        %v1377 = vpop.f32.mrb[0].mxu0
        %v1378 = vpop.f32.mrb[0].mxu0
        %v1379 = vadd.f32 0.0, %v1378
        %v1380 = vpop.f32.mrb[0].mxu0
        %1381 = vmatprep.mubr.bf16.mxu0 0
        %1382 = vmatmul.mubr.bf16.gmra.mrb[0].mxu0 %v1253
        %v1383 = vpop.f32.mrb[0].mxu0
        %v1384 = vadd.f32 0.0, %v1383
        %v1385 = vpop.f32.mrb[0].mxu0
        %v1386 = vpop.f32.mrb[0].mxu0
        %v1387 = vadd.f32 0.0, %v1386
        %v1388 = vpop.f32.mrb[0].mxu0
        %1389 = vmatprep.mubr.bf16.mxu0 0
        %1390 = vmatmul.mubr.bf16.gmra.mrb[0].mxu0 %v1256
        %v1391 = vpop.f32.mrb[0].mxu0
        %v1392 = vadd.f32 0.0, %v1391
        %v1393 = vpop.f32.mrb[0].mxu0
        %v1394 = vpop.f32.mrb[0].mxu0
        %v1395 = vadd.f32 0.0, %v1394
        %v1396 = vpop.f32.mrb[0].mxu0
        %1397 = vmatprep.mubr.bf16.mxu0 0
        %1398 = vmatmul.mubr.bf16.gmra.mrb[0].mxu0 %v1259
        %v1399 = vpop.f32.mrb[0].mxu0
        %v1400 = vadd.f32 0.0, %v1399
        %v1401 = vpop.f32.mrb[0].mxu0
        %v1402 = vpop.f32.mrb[0].mxu0
        %v1403 = vadd.f32 0.0, %v1402
        %v1404 = vpop.f32.mrb[0].mxu0
        %1405 = vmatprep.mubr.bf16.mxu0 0
        %1406 = vmatmul.mubr.bf16.gmra.mrb[0].mxu0 %v1262
        %v1407 = vpop.f32.mrb[0].mxu0
        %v1408 = vadd.f32 0.0, %v1407
        %v1409 = vpop.f32.mrb[0].mxu0
        %v1410 = vpop.f32.mrb[0].mxu0
        %v1411 = vadd.f32 0.0, %v1410
        %v1412 = vpop.f32.mrb[0].mxu0
        %1413 = vmatprep.mubr.bf16.mxu0 0
        %1414 = vmatmul.mubr.bf16.gmra.mrb[0].mxu0 %v1265
        %v1415 = vpop.f32.mrb[0].mxu0
        %v1416 = vadd.f32 0.0, %v1415
        %v1417 = vpop.f32.mrb[0].mxu0
        %v1418 = vpop.f32.mrb[0].mxu0
        %v1419 = vadd.f32 0.0, %v1418
        %v1420 = vpop.f32.mrb[0].mxu0
        %1421 = vmatprep.mubr.bf16.mxu0 0
        %1422 = vmatmul.mubr.bf16.gmra.mrb[0].mxu0 %v1268
        %v1423 = vpop.f32.mrb[0].mxu0
        %v1424 = vadd.f32 0.0, %v1423
        %v1425 = vpop.f32.mrb[0].mxu0
        %v1426 = vpop.f32.mrb[0].mxu0
        %v1427 = vadd.f32 0.0, %v1426
        %v1428 = vpop.f32.mrb[0].mxu0
        %1429 = vmatprep.mubr.bf16.mxu0 0
        %1430 = vmatmul.mubr.bf16.gmra.mrb[0].mxu0 %v1271
        %v1431 = vpop.f32.mrb[0].mxu0
        %v1432 = vadd.f32 0.0, %v1431
        %v1433 = vpop.f32.mrb[0].mxu0
        %v1434 = vpop.f32.mrb[0].mxu0
        %v1435 = vadd.f32 0.0, %v1434
        %v1436 = vpop.f32.mrb[0].mxu0
        %1437 = vdwg.mxu0
        %v1438 = vpack.c.bf16 %v1315, %v1312
        %v1439 = vpack.c.bf16 %v1323, %v1320
        %v1440 = vpack.c.bf16 %v1331, %v1328
        %v1441 = vpack.c.bf16 %v1339, %v1336
        %v1442 = vpack.c.bf16 %v1347, %v1344
        %v1443 = vpack.c.bf16 %v1355, %v1352
        %v1444 = vpack.c.bf16 %v1363, %v1360
        %v1445 = vpack.c.bf16 %v1371, %v1368
        %v1446 = vpack.c.bf16 %v1379, %v1376
        %v1447 = vpack.c.bf16 %v1387, %v1384
        %v1448 = vpack.c.bf16 %v1395, %v1392
        %v1449 = vpack.c.bf16 %v1403, %v1400
        %v1450 = vpack.c.bf16 %v1411, %v1408
        %v1451 = vpack.c.bf16 %v1419, %v1416
        %v1452 = vpack.c.bf16 %v1427, %v1424
        %v1453 = vpack.c.bf16 %v1435, %v1432
        %v1470 = vunpack.c.l.b16 %v1438
        %v1471 = vunpack.c.h.b16 %v1438
        %v1472 = vunpack.c.l.b16 %v1439
        %v1473 = vunpack.c.h.b16 %v1439
        %v1474 = vunpack.c.l.b16 %v1440
        %v1475 = vunpack.c.h.b16 %v1440
        %v1476 = vunpack.c.l.b16 %v1441
        %v1477 = vunpack.c.h.b16 %v1441
        %v1478 = vunpack.c.l.b16 %v1442
        %v1479 = vunpack.c.h.b16 %v1442
        %v1480 = vunpack.c.l.b16 %v1443
        %v1481 = vunpack.c.h.b16 %v1443
        %v1482 = vunpack.c.l.b16 %v1444
        %v1483 = vunpack.c.h.b16 %v1444
        %v1484 = vunpack.c.l.b16 %v1445
        %v1485 = vunpack.c.h.b16 %v1445
        %v1486 = vunpack.c.l.b16 %v1446
        %v1487 = vunpack.c.h.b16 %v1446
        %v1488 = vunpack.c.l.b16 %v1447
        %v1489 = vunpack.c.h.b16 %v1447
        %v1490 = vunpack.c.l.b16 %v1448
        %v1491 = vunpack.c.h.b16 %v1448
        %v1492 = vunpack.c.l.b16 %v1449
        %v1493 = vunpack.c.h.b16 %v1449
        %v1494 = vunpack.c.l.b16 %v1450
        %v1495 = vunpack.c.h.b16 %v1450
        %v1496 = vunpack.c.l.b16 %v1451
        %v1497 = vunpack.c.h.b16 %v1451
        %v1498 = vunpack.c.l.b16 %v1452
        %v1499 = vunpack.c.h.b16 %v1452
        %v1500 = vunpack.c.l.b16 %v1453
        %v1501 = vunpack.c.h.b16 %v1453
        %v1502 = vpack.c.b16 %v1470, %v1470
        %v1503 = vpack.c.b16 %v1471, %v1471
        %v1504 = vpack.c.b16 %v1472, %v1472
        %v1505 = vpack.c.b16 %v1473, %v1473
        %v1506 = vpack.c.b16 %v1474, %v1474
        %v1507 = vpack.c.b16 %v1475, %v1475
        %v1508 = vpack.c.b16 %v1476, %v1476
        %v1509 = vpack.c.b16 %v1477, %v1477
        %v1510 = vpack.c.b16 %v1478, %v1478
        %v1511 = vpack.c.b16 %v1479, %v1479
        %v1512 = vpack.c.b16 %v1480, %v1480
        %v1513 = vpack.c.b16 %v1481, %v1481
        %v1514 = vpack.c.b16 %v1482, %v1482
        %v1515 = vpack.c.b16 %v1483, %v1483
        %v1516 = vpack.c.b16 %v1484, %v1484
        %v1517 = vpack.c.b16 %v1485, %v1485
        %v1518 = vpack.c.b16 %v1486, %v1486
        %v1519 = vpack.c.b16 %v1487, %v1487
        %v1520 = vpack.c.b16 %v1488, %v1488
        %v1521 = vpack.c.b16 %v1489, %v1489
        %v1522 = vpack.c.b16 %v1490, %v1490
        %v1523 = vpack.c.b16 %v1491, %v1491
        %v1524 = vpack.c.b16 %v1492, %v1492
        %v1525 = vpack.c.b16 %v1493, %v1493
        %v1526 = vpack.c.b16 %v1494, %v1494
        %v1527 = vpack.c.b16 %v1495, %v1495
        %v1528 = vpack.c.b16 %v1496, %v1496
        %v1529 = vpack.c.b16 %v1497, %v1497
        %v1530 = vpack.c.b16 %v1498, %v1498
        %v1531 = vpack.c.b16 %v1499, %v1499
        %v1532 = vpack.c.b16 %v1500, %v1500
        %v1533 = vpack.c.b16 %v1501, %v1501
        %vm1566 = vcmask 781312
        %1567 = vst.msk [vmem:[%s163] sm:$0xf] %vm1566, %v1502
        %1568 = vst.msk [vmem:[%s163 + $0x4] sm:$0xf] %vm1566, %v1503
        %1569 = vst.msk [vmem:[%s163 + $0x8] sm:$0xf] %vm1566, %v1504
        %1570 = vst.msk [vmem:[%s163 + $0xc] sm:$0xf] %vm1566, %v1505
        %1571 = vst.msk [vmem:[%s163 + $0x10] sm:$0xf] %vm1566, %v1506
        %1572 = vst.msk [vmem:[%s163 + $0x14] sm:$0xf] %vm1566, %v1507
        %1573 = vst.msk [vmem:[%s163 + $0x18] sm:$0xf] %vm1566, %v1508
        %1574 = vst.msk [vmem:[%s163 + $0x1c] sm:$0xf] %vm1566, %v1509
        %1575 = vst.msk [vmem:[%s163 + $0x20] sm:$0xf] %vm1566, %v1510
        %1576 = vst.msk [vmem:[%s163 + $0x24] sm:$0xf] %vm1566, %v1511
        %1577 = vst.msk [vmem:[%s163 + $0x28] sm:$0xf] %vm1566, %v1512
        %1578 = vst.msk [vmem:[%s163 + $0x2c] sm:$0xf] %vm1566, %v1513
        %1579 = vst.msk [vmem:[%s163 + $0x30] sm:$0xf] %vm1566, %v1514
        %1580 = vst.msk [vmem:[%s163 + $0x34] sm:$0xf] %vm1566, %v1515
        %1581 = vst.msk [vmem:[%s163 + $0x38] sm:$0xf] %vm1566, %v1516
        %1582 = vst.msk [vmem:[%s163 + $0x3c] sm:$0xf] %vm1566, %v1517
        %1583 = vst.msk [vmem:[%s163 + $0x40] sm:$0xf] %vm1566, %v1518
        %1584 = vst.msk [vmem:[%s163 + $0x44] sm:$0xf] %vm1566, %v1519
        %1585 = vst.msk [vmem:[%s163 + $0x48] sm:$0xf] %vm1566, %v1520
        %1586 = vst.msk [vmem:[%s163 + $0x4c] sm:$0xf] %vm1566, %v1521
        %1587 = vst.msk [vmem:[%s163 + $0x50] sm:$0xf] %vm1566, %v1522
        %1588 = vst.msk [vmem:[%s163 + $0x54] sm:$0xf] %vm1566, %v1523
        %1589 = vst.msk [vmem:[%s163 + $0x58] sm:$0xf] %vm1566, %v1524
        %1590 = vst.msk [vmem:[%s163 + $0x5c] sm:$0xf] %vm1566, %v1525
        %1591 = vst.msk [vmem:[%s163 + $0x60] sm:$0xf] %vm1566, %v1526
        %1592 = vst.msk [vmem:[%s163 + $0x64] sm:$0xf] %vm1566, %v1527
        %1593 = vst.msk [vmem:[%s163 + $0x68] sm:$0xf] %vm1566, %v1528
        %1594 = vst.msk [vmem:[%s163 + $0x6c] sm:$0xf] %vm1566, %v1529
        %1595 = vst.msk [vmem:[%s163 + $0x70] sm:$0xf] %vm1566, %v1530
        %1596 = vst.msk [vmem:[%s163 + $0x74] sm:$0xf] %vm1566, %v1531
        %1597 = vst.msk [vmem:[%s163 + $0x78] sm:$0xf] %vm1566, %v1532
        %1598 = vst.msk [vmem:[%s163 + $0x7c] sm:$0xf] %vm1566, %v1533
        %s1599 = sand.u32 %s93, 1
        %s1600 = scalar_lea.sflag [#allocation4], %s1599
        %s1601 = sand.u32 %s93, 1
        %s1602 = smul.addr %s1601, 128
        %s1603 = scalar_lea.vmem [#allocation3], %s1602
        // Predicated region
        $region37: #{tpu_custom_call.1} parent=31 // pred_check
          %p1604 = pneg %p103
        $region38: #{tpu_custom_call.1} parent=31 // pred_check_branch
          %1606 = sbr.rel (%p1604) target = $region40
        $region39: #{tpu_custom_call.1} parent=31 // pred_region
          %s1608 = ssub.s32 2048, 2048
          %1609 = vsyncadd %s1600, %s1608
          %s1610 = smul.addr %s17, 32
          %s1611 = smul.addr %s1610, 64
          %s1612 = scalar_lea.hbm %s3, %s1611
          %s1613 = sshll.u32 %s1603, 4
          %s1614 = int_to_ptr.vmem [resolvable:$true] %s1613
          %1619 = dma.vmem_to_hbm [thread:$0]  %s1614, 2048, %s1612, %s1600, 64, 64, 4
        $region40: #{tpu_custom_call.1} parent=31 // pred_fallthru
          _
      $region32: #{tpu_custom_call.1} parent=5 // pred_fallthru
        _
      %p1620 = scmp.le.s32.totalorder 2, %s12
      // Predicated region
      $region41: #{tpu_custom_call.1} parent=5 // pred_check
        %p1621 = pneg %p1620
      $region42: #{tpu_custom_call.1} parent=5 // pred_check_branch
        %1623 = sbr.rel (%p1621) target = $region44
      $region43: #{tpu_custom_call.1} parent=5 // pred_region
        %s1624 = ssub.s32 %s12, 2
        // Predicated region
        $region45: #{tpu_custom_call.1} parent=43 // pred_check
          %p1625 = pneg %p109
        $region46: #{tpu_custom_call.1} parent=43 // pred_check_branch
          %1627 = sbr.rel (%p1625) target = $region48
        $region47: #{tpu_custom_call.1} parent=43 // pred_region
          %s1628 = sand.u32 %s94, 1
          %s1629 = scalar_lea.sflag [#allocation4], %s1628
          %s1630 = sand.u32 %s94, 1
          %s1631 = smul.addr %s1630, 128
          %s1632 = scalar_lea.vmem [#allocation3], %s1631
          %1633 = dma.done %s1629, 2048
        $region48: #{tpu_custom_call.1} parent=43 // pred_fallthru
          _
      $region44: #{tpu_custom_call.1} parent=5 // pred_fallthru
        _
    $region6: #{tpu_custom_call.1} parent=1 // loop_footer
      %s16 = sadd.s32 1, %s12
    $region7: #{tpu_custom_call.1} parent=1 // loop_footer_branch
      %11 = sbr.rel target = $region3
    $region8: #{tpu_custom_call.1} parent=1 // loop_exit
      _
    %1634 = vsyncpa [#allocation4], 1
    %s1635 = scalar_lea.sflag [#allocation4], 1
    %1636 = vsyncpa %s1635, 1

</llo_original>
